<compile_context>
chip_gen: v7x
topology: tpu7x:2x2x1
jax: 0.10.0
libtpu: 0.0.40
codegen_flags: <defaults>
</compile_context>

<pallas_src>
import functools

import jax
import jax.numpy as jnp
from jax.experimental import pallas as pl
from jax.experimental.pallas import tpu as pltpu

COMPUTE_DTYPE = jnp.bfloat16   # MXU-native matmul dtype; all accumulation is f32.


def _round_up(x, m):
    return ((x + m - 1) // m) * m


# ---------------------------------------------------------------------------
# Fused kernel: grid = (num_layers, num_dst_row_tiles of the dense adjacency)
# ---------------------------------------------------------------------------
def _embedder_kernel(a_ref, x0_ref, w_ref, bnb_ref, pool_ref, out_ref,
                     x_scr, y_scr, h_scr, *,
                     num_et, n_real, n_pad, d_pad, d_out, tile_r, eps,
                     compute_dtype):
    r = pl.program_id(1)
    nt = pl.num_programs(1)

    # ---- one-time init: layer-0 node features into the feature scratch -----
    @pl.when(jnp.logical_and(pl.program_id(0) == 0, r == 0))
    def _init_features():
        x_scr[...] = x0_ref[...]

    w = w_ref[0]                                  # [(1+ne)*d_pad, d_out] bf16
    bnb = bnb_ref[0]                              # [3, d_out] f32
    bias, gamma, beta = bnb[0:1, :], bnb[1:2, :], bnb[2:3, :]
    wl = w[0:d_pad, :]

    # ---- per-layer prologue (r == 0): y_et = x @ Wc_et, stacked over et ----
    @pl.when(r == 0)
    def _transform_features():
        x_c = x_scr[...].astype(compute_dtype)                       # [n_pad, d_pad]
        for et in range(num_et):                                     # static unroll
            wc = w[(1 + et) * d_pad:(2 + et) * d_pad, :]
            y = jnp.dot(x_c, wc, preferred_element_type=jnp.float32)
            y_scr[et * n_pad:(et + 1) * n_pad, :] = y.astype(compute_dtype)

    # ---- streaming step: one dst-row tile of the adjacency -----------------
    row0 = pl.multiple_of(r * tile_r, tile_r)
    a_tile = a_ref[...].astype(compute_dtype)      # int8 -> bf16, [tile_r, ne*n_pad]
    agg = jnp.dot(a_tile, y_scr[...],
                  preferred_element_type=jnp.float32)                # [tile_r, d_out]
    x_tile = x_scr[pl.ds(row0, tile_r), :].astype(compute_dtype)
    lin = jnp.dot(x_tile, wl, preferred_element_type=jnp.float32)
    h_scr[pl.ds(row0, tile_r), :] = jnp.maximum(agg + lin + bias, 0.0)

    # ---- layer epilogue (last tile): BatchNorm + norm_pool ------------------
    @pl.when(r == nt - 1)
    def _finalize_layer():
        h = h_scr[...]                                               # [n_pad, d_out] f32
        ids = jax.lax.broadcasted_iota(jnp.int32, (n_pad, 1), 0)
        mask = (ids < n_real).astype(jnp.float32)                    # pad-row mask
        inv_n = 1.0 / float(n_real)
        mean = jnp.sum(h * mask, axis=0, keepdims=True) * inv_n
        diff = (h - mean) * mask
        var = jnp.sum(diff * diff, axis=0, keepdims=True) * inv_n    # two-pass, stable
        scale = gamma * jax.lax.rsqrt(var + eps)                     # fused BN affine
        shift = beta - mean * scale
        hn = (h * scale + shift) * mask                              # padded rows -> 0
        # norm_pool: pool rows are pre-scaled by 1/sqrt(nodes-per-graph)
        out_ref[0] = jnp.dot(pool_ref[...], hn,
                             preferred_element_type=jnp.float32)     # [G, d_out]
        # next layer's input features
        if d_pad == d_out:
            x_scr[...] = hn
        else:
            x_scr[:, 0:d_out] = hn
            x_scr[:, d_out:] = jnp.zeros((n_pad, d_pad - d_out), jnp.float32)


# ---------------------------------------------------------------------------
# Wrapper: padding, weight fusion, BlockSpecs, one pallas_call for the forward
# ---------------------------------------------------------------------------
def embedder_forward(params, x, edge_index, edge_attr, batch,
                     edge_types=(0, 1, 2), num_graphs=2, eps=1e-5,
                     compute_dtype=COMPUTE_DTYPE):
    n_real, dim_input = x.shape
    num_et = len(edge_types)
    num_layers = len(params)
    d_out = params[0]["Wl"].shape[1]
    d_pad = max(dim_input, d_out)                  # uniform K for stacked weights
    g = num_graphs

    # Row tiling of the dense adjacency (>= 512 rows for big graphs).
    tile_r = 512 if n_real > 512 else _round_up(max(n_real, 1), 128)
    n_pad = _round_up(n_real, tile_r)
    nt = n_pad // tile_r

    a_h = build_adjacency_h(edge_index, edge_attr, n_pad, edge_types)   # int8 [n_pad, ne*n_pad]
    pool = build_pool(batch, g, n_pad)                                  # f32  [g, n_pad]
    x0 = jnp.zeros((n_pad, d_pad), jnp.float32).at[:n_real, :dim_input].set(
        x.astype(jnp.float32))
    w_all, bnb_all = stack_params(params, num_et, d_pad, d_out, compute_dtype)

    # ---- VMEM budget / pipeline depth ---------------------------------------
    try:
        vmem_cap = int(pltpu.get_tpu_info().vmem_capacity_bytes)
    except Exception:
        vmem_cap = 64 * 2 ** 20                    # v7x-safe lower bound
    a_tile_bytes = tile_r * num_et * n_pad         # int8 tile
    n_buf_a = 3 if 3 * a_tile_bytes <= 24 * 2 ** 20 else 2
    resident = (n_buf_a * a_tile_bytes
                + 2 * x0.size * 4 + 2 * w_all.size * 2 + 2 * bnb_all.size * 4
                + 2 * pool.size * 4 + 2 * g * d_out * 4
                + n_pad * d_pad * 4 + num_et * n_pad * d_out * 2 + n_pad * d_out * 4)
    vmem_limit = int(min(0.85 * vmem_cap, max(32 * 2 ** 20, 2 * resident)))

    flops = int(num_layers * (2 * num_et * n_pad * d_pad * d_out          # y_et
                              + 2 * n_pad * num_et * n_pad * d_out        # A_h @ Y
                              + 2 * n_pad * d_pad * d_out                 # linear
                              + 2 * g * n_pad * d_out))                   # pooling
    bytes_accessed = int(num_layers * a_h.size                            # A streamed per layer
                         + x0.size * 4 + w_all.size * 2 + bnb_all.size * 4
                         + pool.size * 4 + num_layers * g * d_out * 4)

    kernel = functools.partial(
        _embedder_kernel, num_et=num_et, n_real=n_real, n_pad=n_pad,
        d_pad=d_pad, d_out=d_out, tile_r=tile_r, eps=eps,
        compute_dtype=compute_dtype)

    def build_call(use_buffered):
        a_kwargs = {"pipeline_mode": pl.Buffered(n_buf_a)} if use_buffered else {}
        grid_spec = pltpu.PrefetchScalarGridSpec(
            num_scalar_prefetch=0,
            grid=(num_layers, nt),
            in_specs=[
                pl.BlockSpec((tile_r, num_et * n_pad), lambda l, r: (r, 0),
                             **a_kwargs),                                   # A (streamed)
                pl.BlockSpec((n_pad, d_pad), lambda l, r: (0, 0)),          # x0 (resident)
                pl.BlockSpec((1, (1 + num_et) * d_pad, d_out),
                             lambda l, r: (l, 0, 0)),                       # fused weights
                pl.BlockSpec((1, 3, d_out), lambda l, r: (l, 0, 0)),        # bias/gamma/beta
                pl.BlockSpec((g, n_pad), lambda l, r: (0, 0)),              # pool (resident)
            ],
            out_specs=pl.BlockSpec((1, g, d_out), lambda l, r: (l, 0, 0)),
            scratch_shapes=[
                pltpu.VMEM((n_pad, d_pad), jnp.float32),                    # current features
                pltpu.VMEM((num_et * n_pad, d_out), compute_dtype),         # stacked y_et
                pltpu.VMEM((n_pad, d_out), jnp.float32),                    # pre-BN relu out
            ],
        )
        return pl.pallas_call(
            kernel,
            grid_spec=grid_spec,
            out_shape=jax.ShapeDtypeStruct((num_layers, g, d_out), jnp.float32),
            compiler_params=pltpu.CompilerParams(
                dimension_semantics=("arbitrary", "arbitrary"),
                vmem_limit_bytes=vmem_limit),
            cost_estimate=pl.CostEstimate(flops=flops,
                                          transcendentals=num_layers * d_out,
                                          bytes_accessed=bytes_accessed),
        )

    args = (a_h, x0, w_all, bnb_all, pool)
    try:
        out = jax.block_until_ready(build_call(True)(*args))   # Buffered(3) on A
    except Exception:
        out = jax.block_until_ready(build_call(False)(*args))  # default double-buffer

    # [L, G, D] -> [G, L*D] to match torch.cat(per-layer graph reprs, dim=1)
    return jnp.transpose(out, (1, 0, 2)).reshape(g, num_layers * d_out)


# ---------------------------------------------------------------------------
# Plain-JAX glue: adjacency / pooling construction, parameter stacking & init
# ---------------------------------------------------------------------------
def build_adjacency_h(edge_index, edge_attr, n_pad, edge_types):
    """int8 dense adjacency, edge types concatenated along columns.

    A_h[dst, et*n_pad + src] = #edges src->dst of type edge_types[et]."""
    src, dst = edge_index[0], edge_index[1]
    cols = []
    for et in edge_types:
        m = (edge_attr == et).astype(jnp.int32)
        a = jnp.zeros((n_pad, n_pad), jnp.int32).at[dst, src].add(m)
        cols.append(a)
    a = jnp.concatenate(cols, axis=1)                      # [n_pad, ne*n_pad]
    return jnp.minimum(a, 127).astype(jnp.int8)            # exact small counts


def build_pool(batch, num_graphs, n_pad):
    """Pool matrix with rows pre-scaled by 1/sqrt(nodes-per-graph); pad nodes = 0."""
    n = batch.shape[0]
    node_ids = jnp.arange(n_pad)
    batch_p = jnp.where(node_ids < n,
                        jnp.pad(batch.astype(jnp.int32), (0, n_pad - n)), -1)
    onehot = (batch_p[None, :] == jnp.arange(num_graphs)[:, None]).astype(jnp.float32)
    counts = jnp.maximum(onehot.sum(axis=1, keepdims=True), 1.0)
    return onehot / jnp.sqrt(counts)                       # [G, n_pad]


def stack_params(params, num_et, d_pad, d_out, compute_dtype):
    """Stack per-layer weights: [L,(1+ne)*d_pad,d_out] bf16 and [L,3,d_out] f32."""
    w_all, bnb_all = [], []
    for p in params:
        din = p["Wl"].shape[0]

        def padk(w):
            return jnp.pad(w, ((0, d_pad - din), (0, 0)))
        blocks = [padk(p["Wl"])] + [padk(p["Wc"][et]) for et in range(num_et)]
        w_all.append(jnp.concatenate(blocks, axis=0))
        bias = (p["bl"] + jnp.sum(p["bc"], axis=0)).reshape(1, d_out)   # folded biases
        bnb_all.append(jnp.concatenate(
            [bias, p["gamma"].reshape(1, d_out), p["beta"].reshape(1, d_out)], axis=0))
    return (jnp.stack(w_all).astype(compute_dtype),
            jnp.stack(bnb_all).astype(jnp.float32))


def init_embedder_params(key, num_layers, dim_embed, dim_input, num_et):
    params = []
    for i in range(num_layers):
        din = dim_input if i == 0 else dim_embed
        key, k1, k2, k3, k4 = jax.random.split(key, 5)
        params.append(dict(
            Wc=0.1 * jax.random.normal(k1, (num_et, din, dim_embed), jnp.float32),
            bc=0.1 * jax.random.normal(k2, (num_et, 1, dim_embed), jnp.float32),
            Wl=0.1 * jax.random.normal(k3, (din, dim_embed), jnp.float32),
            bl=0.1 * jax.random.normal(k4, (1, dim_embed), jnp.float32),
            gamma=jnp.ones((1, dim_embed), jnp.float32),
            beta=jnp.zeros((1, dim_embed), jnp.float32),
        ))
    return params


# ---------------------------------------------------------------------------
if __name__ == "__main__":
    num_layers = 2
    dim_embed = 32
    dim_input = 3
    edge_types = (0, 1, 2)
    N = 16            # nodes
    E = 40            # edges
    G = 2             # graphs

    key = jax.random.PRNGKey(0)
    kx, ke1, ke2, ka, kp = jax.random.split(key, 5)

    x = jax.random.normal(kx, (N, dim_input), jnp.float32)
    edge_index = jnp.stack([jax.random.randint(ke1, (E,), 0, N),
                            jax.random.randint(ke2, (E,), 0, N)], axis=0)   # [2, E]
    edge_attr = jax.random.randint(ka, (E,), 0, len(edge_types))            # [E]
    batch = jnp.concatenate([jnp.zeros((N // 2,), jnp.int32),
                             jnp.ones((N - N // 2,), jnp.int32)])           # [N]

    params = init_embedder_params(kp, num_layers, dim_embed, dim_input,
                                  len(edge_types))

    out = embedder_forward(params, x, edge_index, edge_attr, batch,
                           edge_types=edge_types, num_graphs=G)
    out = jax.block_until_ready(out)
    assert out.shape == (G, dim_embed * num_layers)
    assert bool(jnp.all(jnp.isfinite(out)))
    print("KERNEL_OK")
</pallas_src>

<mosaic_0001>
module attributes {stable_mosaic.version = 11 : i64} {
  func.func @_embedder_kernel(%arg0: i32, %arg1: i32, %arg2: memref<128x384xi8, #tpu.memory_space<vmem>>, %arg3: memref<128x32xf32, #tpu.memory_space<vmem>>, %arg4: memref<1x128x32xbf16, #tpu.memory_space<vmem>>, %arg5: memref<1x3x32xf32, #tpu.memory_space<vmem>>, %arg6: memref<2x128xf32, #tpu.memory_space<vmem>>, %arg7: memref<1x2x32xf32, #tpu.memory_space<vmem>>, %arg8: memref<128x32xf32, #tpu.memory_space<vmem>>, %arg9: memref<384x32xbf16, #tpu.memory_space<vmem>>, %arg10: memref<128x32xf32, #tpu.memory_space<vmem>>) attributes {dimension_semantics = [#tpu.dimension_semantics<arbitrary>, #tpu.dimension_semantics<arbitrary>], iteration_bounds = array<i64: 2, 1>, scalar_prefetch = 0 : i64, scratch_operands = 3 : i64, tpu.core_type = #tpu.core_type<tc>, window_params = [{transform_indices = @transform_0, window_bounds = array<i64: 128, 384>}, {pipeline_mode = #tpu.pipeline_mode<synchronous>, transform_indices = @transform_1, window_bounds = array<i64: 128, 32>}, {transform_indices = @transform_2, window_bounds = array<i64: 1, 128, 32>}, {transform_indices = @transform_3, window_bounds = array<i64: 1, 3, 32>}, {pipeline_mode = #tpu.pipeline_mode<synchronous>, transform_indices = @transform_4, window_bounds = array<i64: 2, 128>}, {transform_indices = @transform_5, window_bounds = array<i64: 1, 2, 32>}]} {
    %c0_i32 = arith.constant 0 : i32
    %0 = arith.cmpi eq, %arg0, %c0_i32 : i32
    %c0_i32_0 = arith.constant 0 : i32
    %1 = arith.cmpi eq, %arg1, %c0_i32_0 : i32
    %2 = arith.andi %0, %1 : i1
    %3 = arith.extui %2 : i1 to i32
    %c0_i32_1 = arith.constant 0 : i32
    %4 = arith.cmpi ne, %3, %c0_i32_1 : i32
    scf.if %4 {
      %c0_19 = arith.constant 0 : index
      %c0_20 = arith.constant 0 : index
      %36 = vector.load %arg3[%c0_19, %c0_20] : memref<128x32xf32, #tpu.memory_space<vmem>>, vector<128x32xf32>
      %c0_21 = arith.constant 0 : index
      %c0_22 = arith.constant 0 : index
      %37 = vector.load %arg8[%c0_21, %c0_22] : memref<128x32xf32, #tpu.memory_space<vmem>>, vector<128x32xf32>
      tpu.vector_store %arg8[%c0_21, %c0_22], %36 {strides = array<i32>} : memref<128x32xf32, #tpu.memory_space<vmem>>, vector<128x32xf32>,
    } else {
    }
    %c0 = arith.constant 0 : index
    %c0_2 = arith.constant 0 : index
    %c0_3 = arith.constant 0 : index
    %5 = vector.load %arg4[%c0, %c0_2, %c0_3] : memref<1x128x32xbf16, #tpu.memory_space<vmem>>, vector<1x128x32xbf16>
    %6 = vector.shape_cast %5 : vector<1x128x32xbf16> to vector<128x32xbf16>
    %c0_4 = arith.constant 0 : index
    %c0_5 = arith.constant 0 : index
    %c0_6 = arith.constant 0 : index
    %7 = vector.load %arg5[%c0_4, %c0_5, %c0_6] : memref<1x3x32xf32, #tpu.memory_space<vmem>>, vector<1x3x32xf32>
    %8 = vector.shape_cast %7 : vector<1x3x32xf32> to vector<3x32xf32>
    %9 = vector.extract_strided_slice %8 {offsets = [0, 0], sizes = [1, 32], strides = [1, 1]} : vector<3x32xf32> to vector<1x32xf32>
    %10 = vector.extract_strided_slice %8 {offsets = [1, 0], sizes = [1, 32], strides = [1, 1]} : vector<3x32xf32> to vector<1x32xf32>
    %11 = vector.extract_strided_slice %8 {offsets = [2, 0], sizes = [1, 32], strides = [1, 1]} : vector<3x32xf32> to vector<1x32xf32>
    %12 = vector.extract_strided_slice %6 {offsets = [0, 0], sizes = [32, 32], strides = [1, 1]} : vector<128x32xbf16> to vector<32x32xbf16>
    %c0_i32_7 = arith.constant 0 : i32
    %13 = arith.cmpi eq, %arg1, %c0_i32_7 : i32
    %14 = arith.extui %13 : i1 to i32
    %c0_i32_8 = arith.constant 0 : i32
    %15 = arith.cmpi ne, %14, %c0_i32_8 : i32
    scf.if %15 {
      %c0_19 = arith.constant 0 : index
      %c0_20 = arith.constant 0 : index
      %36 = vector.load %arg8[%c0_19, %c0_20] : memref<128x32xf32, #tpu.memory_space<vmem>>, vector<128x32xf32>
      %37 = arith.truncf %36 : vector<128x32xf32> to vector<128x32xbf16>
      %38 = vector.extract_strided_slice %6 {offsets = [32, 0], sizes = [32, 32], strides = [1, 1]} : vector<128x32xbf16> to vector<32x32xbf16>
      %cst_21 = arith.constant dense<0.000000e+00> : vector<128x32xf32>
      %39 = tpu.matmul %37, %38, %cst_21 {dimension_numbers = #tpu.dot_dimension_numbers<[1], [0], [0], [1], [0, 0, 1, 1], [], []>} : vector<128x32xbf16>, vector<32x32xbf16>, vector<128x32xf32> -> vector<128x32xf32>
      %40 = arith.truncf %39 : vector<128x32xf32> to vector<128x32xbf16>
      %c0_22 = arith.constant 0 : index
      %c0_23 = arith.constant 0 : index
      %41 = vector.load %arg9[%c0_22, %c0_23] : memref<384x32xbf16, #tpu.memory_space<vmem>>, vector<128x32xbf16>
      tpu.vector_store %arg9[%c0_22, %c0_23], %40 {strides = array<i32>} : memref<384x32xbf16, #tpu.memory_space<vmem>>, vector<128x32xbf16>,
      %42 = vector.extract_strided_slice %6 {offsets = [64, 0], sizes = [32, 32], strides = [1, 1]} : vector<128x32xbf16> to vector<32x32xbf16>
      %cst_24 = arith.constant dense<0.000000e+00> : vector<128x32xf32>
      %43 = tpu.matmul %37, %42, %cst_24 {dimension_numbers = #tpu.dot_dimension_numbers<[1], [0], [0], [1], [0, 0, 1, 1], [], []>} : vector<128x32xbf16>, vector<32x32xbf16>, vector<128x32xf32> -> vector<128x32xf32>
      %44 = arith.truncf %43 : vector<128x32xf32> to vector<128x32xbf16>
      %c128 = arith.constant 128 : index
      %c0_25 = arith.constant 0 : index
      %45 = vector.load %arg9[%c128, %c0_25] : memref<384x32xbf16, #tpu.memory_space<vmem>>, vector<128x32xbf16>
      tpu.vector_store %arg9[%c128, %c0_25], %44 {strides = array<i32>} : memref<384x32xbf16, #tpu.memory_space<vmem>>, vector<128x32xbf16>,
      %46 = vector.extract_strided_slice %6 {offsets = [96, 0], sizes = [32, 32], strides = [1, 1]} : vector<128x32xbf16> to vector<32x32xbf16>
      %cst_26 = arith.constant dense<0.000000e+00> : vector<128x32xf32>
      %47 = tpu.matmul %37, %46, %cst_26 {dimension_numbers = #tpu.dot_dimension_numbers<[1], [0], [0], [1], [0, 0, 1, 1], [], []>} : vector<128x32xbf16>, vector<32x32xbf16>, vector<128x32xf32> -> vector<128x32xf32>
      %48 = arith.truncf %47 : vector<128x32xf32> to vector<128x32xbf16>
      %c256 = arith.constant 256 : index
      %c0_27 = arith.constant 0 : index
      %49 = vector.load %arg9[%c256, %c0_27] : memref<384x32xbf16, #tpu.memory_space<vmem>>, vector<128x32xbf16>
      tpu.vector_store %arg9[%c256, %c0_27], %48 {strides = array<i32>} : memref<384x32xbf16, #tpu.memory_space<vmem>>, vector<128x32xbf16>,
    } else {
    }
    %c128_i32 = arith.constant 128 : i32
    %16 = arith.muli %arg1, %c128_i32 : i32
    %17 = tpu.assume_multiple %16, 128 : i32
    %c0_9 = arith.constant 0 : index
    %c0_10 = arith.constant 0 : index
    %18 = vector.load %arg2[%c0_9, %c0_10] : memref<128x384xi8, #tpu.memory_space<vmem>>, vector<128x384xi8>
    %19 = arith.sitofp %18 : vector<128x384xi8> to vector<128x384xbf16>
    %c0_11 = arith.constant 0 : index
    %c0_12 = arith.constant 0 : index
    %20 = vector.load %arg9[%c0_11, %c0_12] : memref<384x32xbf16, #tpu.memory_space<vmem>>, vector<384x32xbf16>
    %cst = arith.constant dense<0.000000e+00> : vector<128x32xf32>
    %21 = tpu.matmul %19, %20, %cst {dimension_numbers = #tpu.dot_dimension_numbers<[1], [0], [0], [1], [0, 0, 1, 1], [], []>} : vector<128x384xbf16>, vector<384x32xbf16>, vector<128x32xf32> -> vector<128x32xf32>
    %22 = arith.index_cast %17 : i32 to index
    %c0_13 = arith.constant 0 : index
    %23 = vector.load %arg8[%22, %c0_13] : memref<128x32xf32, #tpu.memory_space<vmem>>, vector<128x32xf32>
    %24 = arith.truncf %23 : vector<128x32xf32> to vector<128x32xbf16>
    %cst_14 = arith.constant dense<0.000000e+00> : vector<128x32xf32>
    %25 = tpu.matmul %24, %12, %cst_14 {dimension_numbers = #tpu.dot_dimension_numbers<[1], [0], [0], [1], [0, 0, 1, 1], [], []>} : vector<128x32xbf16>, vector<32x32xbf16>, vector<128x32xf32> -> vector<128x32xf32>
    %26 = arith.addf %21, %25 : vector<128x32xf32>
    %27 = vector.broadcast %9 : vector<1x32xf32> to vector<128x32xf32>
    %28 = arith.addf %26, %27 : vector<128x32xf32>
    %cst_15 = arith.constant 0.000000e+00 : f32
    %29 = vector.broadcast %cst_15 : f32 to vector<128x32xf32>
    %30 = arith.maximumf %28, %29 : vector<128x32xf32>
    %31 = arith.index_cast %17 : i32 to index
    %c0_16 = arith.constant 0 : index
    %32 = vector.load %arg10[%31, %c0_16] : memref<128x32xf32, #tpu.memory_space<vmem>>, vector<128x32xf32>
    tpu.vector_store %arg10[%31, %c0_16], %30 {strides = array<i32>} : memref<128x32xf32, #tpu.memory_space<vmem>>, vector<128x32xf32>,
    %c0_i32_17 = arith.constant 0 : i32
    %33 = arith.cmpi eq, %arg1, %c0_i32_17 : i32
    %34 = arith.extui %33 : i1 to i32
    %c0_i32_18 = arith.constant 0 : i32
    %35 = arith.cmpi ne, %34, %c0_i32_18 : i32
    scf.if %35 {
      %c0_19 = arith.constant 0 : index
      %c0_20 = arith.constant 0 : index
      %36 = vector.load %arg10[%c0_19, %c0_20] : memref<128x32xf32, #tpu.memory_space<vmem>>, vector<128x32xf32>
      %37 = tpu.iota {dimensions = array<i32: 0>} : vector<128x1xi32>
      %c16_i32 = arith.constant 16 : i32
      %38 = vector.broadcast %c16_i32 : i32 to vector<128x1xi32>
      %39 = arith.cmpi slt, %37, %38 : vector<128x1xi32>
      %40 = arith.extui %39 : vector<128x1xi1> to vector<128x1xi32>
      %41 = arith.sitofp %40 : vector<128x1xi32> to vector<128x1xf32>
      %42 = vector.broadcast %41 : vector<128x1xf32> to vector<128x32xf32>
      %43 = arith.mulf %36, %42 : vector<128x32xf32>
      %cst_21 = arith.constant dense<0.000000e+00> : vector<32xf32>
      %44 = vector.multi_reduction <add>, %43, %cst_21 [0] : vector<128x32xf32> to vector<32xf32>
      %45 = vector.shape_cast %44 : vector<32xf32> to vector<1x32xf32>
      %cst_22 = arith.constant 6.250000e-02 : f32
      %46 = vector.broadcast %cst_22 : f32 to vector<1x32xf32>
      %47 = arith.mulf %45, %46 : vector<1x32xf32>
      %48 = vector.broadcast %47 : vector<1x32xf32> to vector<128x32xf32>
      %49 = arith.subf %36, %48 : vector<128x32xf32>
      %50 = vector.broadcast %41 : vector<128x1xf32> to vector<128x32xf32>
      %51 = arith.mulf %49, %50 : vector<128x32xf32>
      %52 = arith.mulf %51, %51 : vector<128x32xf32>
      %cst_23 = arith.constant dense<0.000000e+00> : vector<32xf32>
      %53 = vector.multi_reduction <add>, %52, %cst_23 [0] : vector<128x32xf32> to vector<32xf32>
      %54 = vector.shape_cast %53 : vector<32xf32> to vector<1x32xf32>
      %cst_24 = arith.constant 6.250000e-02 : f32
      %55 = vector.broadcast %cst_24 : f32 to vector<1x32xf32>
      %56 = arith.mulf %54, %55 : vector<1x32xf32>
      %cst_25 = arith.constant 9.99999974E-6 : f32
      %57 = vector.broadcast %cst_25 : f32 to vector<1x32xf32>
      %58 = arith.addf %56, %57 : vector<1x32xf32>
      %59 = math.rsqrt %58 : vector<1x32xf32>
      %60 = arith.mulf %10, %59 : vector<1x32xf32>
      %61 = arith.mulf %47, %60 : vector<1x32xf32>
      %62 = arith.subf %11, %61 : vector<1x32xf32>
      %63 = vector.broadcast %60 : vector<1x32xf32> to vector<128x32xf32>
      %64 = arith.mulf %36, %63 : vector<128x32xf32>
      %65 = vector.broadcast %62 : vector<1x32xf32> to vector<128x32xf32>
      %66 = arith.addf %64, %65 : vector<128x32xf32>
      %67 = vector.broadcast %41 : vector<128x1xf32> to vector<128x32xf32>
      %68 = arith.mulf %66, %67 : vector<128x32xf32>
      %c0_26 = arith.constant 0 : index
      %c0_27 = arith.constant 0 : index
      %69 = vector.load %arg6[%c0_26, %c0_27] : memref<2x128xf32, #tpu.memory_space<vmem>>, vector<2x128xf32>
      %cst_28 = arith.constant dense<0.000000e+00> : vector<2x32xf32>
      %70 = tpu.matmul %69, %68, %cst_28 {dimension_numbers = #tpu.dot_dimension_numbers<[1], [0], [0], [1], [0, 0, 1, 1], [], []>} : vector<2x128xf32>, vector<128x32xf32>, vector<2x32xf32> -> vector<2x32xf32>
      %c0_29 = arith.constant 0 : index
      %c0_30 = arith.constant 0 : index
      %c0_31 = arith.constant 0 : index
      %71 = vector.load %arg7[%c0_29, %c0_30, %c0_31] : memref<1x2x32xf32, #tpu.memory_space<vmem>>, vector<1x2x32xf32>
      %72 = vector.shape_cast %71 : vector<1x2x32xf32> to vector<2x32xf32>
      %73 = vector.shape_cast %70 : vector<2x32xf32> to vector<1x2x32xf32>
      tpu.vector_store %arg7[%c0_29, %c0_30, %c0_31], %73 {strides = array<i32>} : memref<1x2x32xf32, #tpu.memory_space<vmem>>, vector<1x2x32xf32>,
      %c0_32 = arith.constant 0 : index
      %c0_33 = arith.constant 0 : index
      %74 = vector.load %arg8[%c0_32, %c0_33] : memref<128x32xf32, #tpu.memory_space<vmem>>, vector<128x32xf32>
      tpu.vector_store %arg8[%c0_32, %c0_33], %68 {strides = array<i32>} : memref<128x32xf32, #tpu.memory_space<vmem>>, vector<128x32xf32>,
    } else {
    }
    return
  }
  func.func @transform_0(%arg0: i32, %arg1: i32) -> (i32, i32) {
    %c0_i32 = arith.constant 0 : i32
    %c0_i32_0 = arith.constant 0 : i32
    return %arg1, %c0_i32 : i32, i32
  }
  func.func @transform_1(%arg0: i32, %arg1: i32) -> (i32, i32) {
    %c0_i32 = arith.constant 0 : i32
    %c0_i32_0 = arith.constant 0 : i32
    %c0_i32_1 = arith.constant 0 : i32
    return %c0_i32, %c0_i32_0 : i32, i32
  }
  func.func @transform_2(%arg0: i32, %arg1: i32) -> (i32, i32, i32) {
    %c0_i32 = arith.constant 0 : i32
    %c0_i32_0 = arith.constant 0 : i32
    %c0_i32_1 = arith.constant 0 : i32
    return %arg0, %c0_i32, %c0_i32_0 : i32, i32, i32
  }
  func.func @transform_3(%arg0: i32, %arg1: i32) -> (i32, i32, i32) {
    %c0_i32 = arith.constant 0 : i32
    %c0_i32_0 = arith.constant 0 : i32
    %c0_i32_1 = arith.constant 0 : i32
    return %arg0, %c0_i32, %c0_i32_0 : i32, i32, i32
  }
  func.func @transform_4(%arg0: i32, %arg1: i32) -> (i32, i32) {
    %c0_i32 = arith.constant 0 : i32
    %c0_i32_0 = arith.constant 0 : i32
    %c0_i32_1 = arith.constant 0 : i32
    return %c0_i32, %c0_i32_0 : i32, i32
  }
  func.func @transform_5(%arg0: i32, %arg1: i32) -> (i32, i32, i32) {
    %c0_i32 = arith.constant 0 : i32
    %c0_i32_0 = arith.constant 0 : i32
    %c0_i32_1 = arith.constant 0 : i32
    return %arg0, %c0_i32, %c0_i32_0 : i32, i32, i32
  }
}

</mosaic_0001>

<llo_original>
// kernel: tpu_custom_call.1
$region0: #{tpu_custom_call.1}
  #allocation0 [shape = 'u32[]', space=smem, size = 0x4, offset = 0x4, fixed_abs, tag = 'smem constant byte address 0x4 - core index']
  #allocation1 [shape = 'u32[144,128]{1,0:T(1,128)}', space=vmem, size = 0x12000, scoped, tag = 'internal scratch']
  #allocation2 [shape = 'f32[128,32]{1,0:T(8,128)}', space=vmem, size = 0x10000, scoped, tag = 'scratch operand']
  #allocation3 [shape = 'bf16[384,32]{1,0:T(16,128)(2,1)}', space=vmem, size = 0x18000, scoped, tag = 'scratch operand']
  #allocation4 [shape = 'f32[128,32]{1,0:T(8,128)}', space=vmem, size = 0x10000, scoped, tag = 'scratch operand']
  %s0 = inlined_call_operand.vmem [shape: s8[128,384], index: 0, kind: input, shape index: {}]
  %s1 = inlined_call_operand.vmem [shape: f32[128,32], index: 1, kind: input, shape index: {}]
  %s2 = inlined_call_operand.vmem [shape: bf16[2,128,32], index: 2, kind: input, shape index: {}]
  %s3 = inlined_call_operand.vmem [shape: f32[2,3,32], index: 3, kind: input, shape index: {}]
  %s4 = inlined_call_operand.vmem [shape: f32[2,128], index: 4, kind: input, shape index: {}]
  %s5 = inlined_call_operand.hbm [shape: f32[2,2,32], index: 5, kind: output, shape index: {}]
  %s6 = sld [smem:[#allocation0]]
  $region65: #{tpu_custom_call.1} parent=0
    _
  %s8 = ssub.s32 1, %s6
  %s9 = scalar_select 0, %s8, %s6
  $region1: #{tpu_custom_call.1} parent=0
    #allocation5 [shape = 'u8[2048]{0}', space=vmem, size = 0x800, scoped, tag = 'output window, operand 0']
    #allocation6 [shape = 's32[2]{0}', space=sflag, size = 0x8, scoped, tag = 'scoped memory for tpu_custom_call.1']
    %10 = vsyncpa [#allocation6], 0
    %s11 = scalar_lea.sflag [#allocation6], 1
    %12 = vsyncpa %s11, 0
    loop: start=0, step=1, limit=4
    $region2: #{tpu_custom_call.1} parent=1 // loop_pre_header
      _
    $region3: #{tpu_custom_call.1} parent=1 // loop_header
      %s14 = sphi 0, %s18
      %p15 = scmp.ge.s32.totalorder %s14, 4
      %s21 = sphi 0, %s33
      %s22 = sphi 0, %s29
      %s23 = sphi 0, %s21
      %s24 = sphi 0, %s22
      %s25 = sphi 0, %s23
      %s26 = sphi 0, %s24
      %s36 = sphi 0, %s38
      %s39 = sphi 0, %s36
      %s40 = sphi 0, %s39
      %s56 = sphi 0, %s40
      %s60 = sphi 0, %s60
      %s62 = sphi 0, %s60
      %s63 = sphi 0, %s62
      %s77 = sphi 0, %s63
      %s83 = sphi 0, %s85
      %s86 = sphi 0, %s83
      %s87 = sphi 0, %s86
      %s103 = sphi 0, %s87
      %s109 = sphi 0, %s111
      %s112 = sphi 0, %s109
      %s113 = sphi 0, %s112
      %s129 = sphi 0, %s113
      %s133 = sphi 0, %s133
      %s135 = sphi 0, %s133
      %s136 = sphi 0, %s135
      %s150 = sphi 0, %s136
      %s156 = sphi 0, %s158
      %s159 = sphi 0, %s156
      %s160 = sphi 0, %s159
      %s176 = sphi 0, %s160
    $region4: #{tpu_custom_call.1} parent=1 // loop_header_branch
      %17 = sbr.rel (%p15) target = $region8
    $region5: #{tpu_custom_call.1} parent=1 // loop_body
      %s19 = ssub.s32 %s14, 1
      %s20 = ssub.s32 %s14, 2
      %s27 = sadd.s32 1, %s22
      %p28 = scmp.ge.s32.totalorder %s27, 1
      %s29 = scalar_select %p28, 0, %s27
      %s30 = sadd.s32 1, %s21
      %s31 = scalar_select %p28, %s30, %s21
      %p32 = scmp.ge.s32.totalorder %s31, 2
      %s33 = scalar_select %p32, 0, %s31
      %s34 = ssub.s32 %s22, %s29
      %p35 = scmp.eq.s32.totalorder %s34, 0
      %s37 = sadd.s32 %s36, 1
      %s38 = scalar_select %p35, %s36, %s37
      %p41 = pneg %p35
      %p42 = scmp.eq.s32.totalorder %s14, 1
      %p43 = por %p41, %p42
      %p44 = scmp.ne.s32.totalorder %s36, %s39
      %p45 = scmp.eq.s32.totalorder %s14, 0
      %p46 = por %p44, %p45
      %p47 = scmp.ne.s32.totalorder %s36, %s39
      %p48 = scmp.eq.s32.totalorder %s19, 1
      %p49 = por %p47, %p48
      %p50 = scmp.ne.s32.totalorder %s39, %s40
      %p51 = scmp.eq.s32.totalorder %s19, 0
      %p52 = por %p50, %p51
      %p53 = scmp.ne.s32.totalorder %s39, %s40
      %p54 = scmp.eq.s32.totalorder %s20, 1
      %p55 = por %p53, %p54
      %p57 = scmp.ne.s32.totalorder %s40, %s56
      %p58 = scmp.eq.s32.totalorder %s20, 0
      %p59 = por %p57, %p58
      %s61 = sadd.s32 %s60, 1
      %p64 = scmp.eq.s32.totalorder %s14, 1
      %p65 = scmp.ne.s32.totalorder %s60, %s62
      %p66 = scmp.eq.s32.totalorder %s14, 0
      %p67 = por %p65, %p66
      %p68 = scmp.ne.s32.totalorder %s60, %s62
      %p69 = scmp.eq.s32.totalorder %s19, 1
      %p70 = por %p68, %p69
      %p71 = scmp.ne.s32.totalorder %s62, %s63
      %p72 = scmp.eq.s32.totalorder %s19, 0
      %p73 = por %p71, %p72
      %p74 = scmp.ne.s32.totalorder %s62, %s63
      %p75 = scmp.eq.s32.totalorder %s20, 1
      %p76 = por %p74, %p75
      %p78 = scmp.ne.s32.totalorder %s63, %s77
      %p79 = scmp.eq.s32.totalorder %s20, 0
      %p80 = por %p78, %p79
      %s81 = ssub.s32 %s21, %s33
      %p82 = scmp.eq.s32.totalorder %s81, 0
      %s84 = sadd.s32 %s83, 1
      %s85 = scalar_select %p82, %s83, %s84
      %p88 = pneg %p82
      %p89 = scmp.eq.s32.totalorder %s14, 1
      %p90 = por %p88, %p89
      %p91 = scmp.ne.s32.totalorder %s83, %s86
      %p92 = scmp.eq.s32.totalorder %s14, 0
      %p93 = por %p91, %p92
      %p94 = scmp.ne.s32.totalorder %s83, %s86
      %p95 = scmp.eq.s32.totalorder %s19, 1
      %p96 = por %p94, %p95
      %p97 = scmp.ne.s32.totalorder %s86, %s87
      %p98 = scmp.eq.s32.totalorder %s19, 0
      %p99 = por %p97, %p98
      %p100 = scmp.ne.s32.totalorder %s86, %s87
      %p101 = scmp.eq.s32.totalorder %s20, 1
      %p102 = por %p100, %p101
      %p104 = scmp.ne.s32.totalorder %s87, %s103
      %p105 = scmp.eq.s32.totalorder %s20, 0
      %p106 = por %p104, %p105
      %s107 = ssub.s32 %s21, %s33
      %p108 = scmp.eq.s32.totalorder %s107, 0
      %s110 = sadd.s32 %s109, 1
      %s111 = scalar_select %p108, %s109, %s110
      %p114 = pneg %p108
      %p115 = scmp.eq.s32.totalorder %s14, 1
      %p116 = por %p114, %p115
      %p117 = scmp.ne.s32.totalorder %s109, %s112
      %p118 = scmp.eq.s32.totalorder %s14, 0
      %p119 = por %p117, %p118
      %p120 = scmp.ne.s32.totalorder %s109, %s112
      %p121 = scmp.eq.s32.totalorder %s19, 1
      %p122 = por %p120, %p121
      %p123 = scmp.ne.s32.totalorder %s112, %s113
      %p124 = scmp.eq.s32.totalorder %s19, 0
      %p125 = por %p123, %p124
      %p126 = scmp.ne.s32.totalorder %s112, %s113
      %p127 = scmp.eq.s32.totalorder %s20, 1
      %p128 = por %p126, %p127
      %p130 = scmp.ne.s32.totalorder %s113, %s129
      %p131 = scmp.eq.s32.totalorder %s20, 0
      %p132 = por %p130, %p131
      %s134 = sadd.s32 %s133, 1
      %p137 = scmp.eq.s32.totalorder %s14, 1
      %p138 = scmp.ne.s32.totalorder %s133, %s135
      %p139 = scmp.eq.s32.totalorder %s14, 0
      %p140 = por %p138, %p139
      %p141 = scmp.ne.s32.totalorder %s133, %s135
      %p142 = scmp.eq.s32.totalorder %s19, 1
      %p143 = por %p141, %p142
      %p144 = scmp.ne.s32.totalorder %s135, %s136
      %p145 = scmp.eq.s32.totalorder %s19, 0
      %p146 = por %p144, %p145
      %p147 = scmp.ne.s32.totalorder %s135, %s136
      %p148 = scmp.eq.s32.totalorder %s20, 1
      %p149 = por %p147, %p148
      %p151 = scmp.ne.s32.totalorder %s136, %s150
      %p152 = scmp.eq.s32.totalorder %s20, 0
      %p153 = por %p151, %p152
      %s154 = ssub.s32 %s21, %s33
      %p155 = scmp.eq.s32.totalorder %s154, 0
      %s157 = sadd.s32 %s156, 1
      %s158 = scalar_select %p155, %s156, %s157
      %p161 = pneg %p155
      %p162 = scmp.eq.s32.totalorder %s14, 1
      %p163 = por %p161, %p162
      %p164 = scmp.ne.s32.totalorder %s156, %s159
      %p165 = scmp.eq.s32.totalorder %s14, 0
      %p166 = por %p164, %p165
      %p167 = scmp.ne.s32.totalorder %s156, %s159
      %p168 = scmp.eq.s32.totalorder %s19, 1
      %p169 = por %p167, %p168
      %p170 = scmp.ne.s32.totalorder %s159, %s160
      %p171 = scmp.eq.s32.totalorder %s19, 0
      %p172 = por %p170, %p171
      %p173 = scmp.ne.s32.totalorder %s159, %s160
      %p174 = scmp.eq.s32.totalorder %s20, 1
      %p175 = por %p173, %p174
      %p177 = scmp.ne.s32.totalorder %s160, %s176
      %p178 = scmp.eq.s32.totalorder %s20, 0
      %p179 = por %p177, %p178
      %p180 = scmp.le.s32.totalorder 1, %s14
      %p181 = scmp.lt.s32.totalorder %s14, 3
      %p182 = pnand %p180, %p181
      %p183 = pneg %p182
      // Predicated region
      $region9: #{tpu_custom_call.1} parent=5 // pred_check
        _
      $region10: #{tpu_custom_call.1} parent=5 // pred_check_branch
        %185 = sbr.rel (%p182) target = $region12
      $region11: #{tpu_custom_call.1} parent=5 // pred_region
        %s186 = ssub.s32 %s14, 1
        // Predicated region
        $region13: #{tpu_custom_call.1} parent=11 // pred_check
          %p187 = pneg %p52
        $region14: #{tpu_custom_call.1} parent=11 // pred_check_branch
          %189 = sbr.rel (%p187) target = $region16
        $region15: #{tpu_custom_call.1} parent=11 // pred_region
          %s190 = smul.u32 4, %s24
          %p191 = scmp.lt.s32.totalorder %s190, 3
          %s192 = scalar_select %p191, %s190, 3
          %s193 = smul.addr %s192, 3
          %s194 = smul.addr %s193, 8
          %s195 = scalar_lea.vmem %s0, %s194
          %s196 = smul.u32 4, %s24
        $region16: #{tpu_custom_call.1} parent=11 // pred_fallthru
          _
        // Predicated region
        $region17: #{tpu_custom_call.1} parent=11 // pred_check
          %p197 = pneg %p73
        $region18: #{tpu_custom_call.1} parent=11 // pred_check_branch
          %199 = sbr.rel (%p197) target = $region20
        $region19: #{tpu_custom_call.1} parent=11 // pred_region
          _
        $region20: #{tpu_custom_call.1} parent=11 // pred_fallthru
          _
        // Predicated region
        $region21: #{tpu_custom_call.1} parent=11 // pred_check
          %p200 = pneg %p146
        $region22: #{tpu_custom_call.1} parent=11 // pred_check_branch
          %202 = sbr.rel (%p200) target = $region24
        $region23: #{tpu_custom_call.1} parent=11 // pred_region
          _
        $region24: #{tpu_custom_call.1} parent=11 // pred_fallthru
          _
      $region12: #{tpu_custom_call.1} parent=5 // pred_fallthru
        _
      %p203 = scmp.lt.s32.totalorder %s14, 2
      // Predicated region
      $region25: #{tpu_custom_call.1} parent=5 // pred_check
        %p204 = pneg %p203
      $region26: #{tpu_custom_call.1} parent=5 // pred_check_branch
        %206 = sbr.rel (%p204) target = $region28
      $region27: #{tpu_custom_call.1} parent=5 // pred_region
        // Predicated region
        $region29: #{tpu_custom_call.1} parent=27 // pred_check
          %p207 = pneg %p93
        $region30: #{tpu_custom_call.1} parent=27 // pred_check_branch
          %209 = sbr.rel (%p207) target = $region32
        $region31: #{tpu_custom_call.1} parent=27 // pred_region
          %p210 = scmp.lt.s32.totalorder %s21, 1
          %s211 = scalar_select %p210, %s21, 1
          %s212 = smul.addr %s211, 16
          %s213 = smul.addr %s212, 4
          %s214 = scalar_lea.vmem %s2, %s213
        $region32: #{tpu_custom_call.1} parent=27 // pred_fallthru
          _
        // Predicated region
        $region33: #{tpu_custom_call.1} parent=27 // pred_check
          %p215 = pneg %p119
        $region34: #{tpu_custom_call.1} parent=27 // pred_check_branch
          %217 = sbr.rel (%p215) target = $region36
        $region35: #{tpu_custom_call.1} parent=27 // pred_region
          %p218 = scmp.lt.s32.totalorder %s21, 1
          %s219 = scalar_select %p218, %s21, 1
          %s220 = smul.addr %s219, 4
          %s221 = scalar_lea.vmem %s3, %s220
        $region36: #{tpu_custom_call.1} parent=27 // pred_fallthru
          _
      $region28: #{tpu_custom_call.1} parent=5 // pred_fallthru
        _
      %p222 = scmp.le.s32.totalorder 1, %s14
      %p223 = scmp.lt.s32.totalorder %s14, 3
      %p224 = pnand %p222, %p223
      %p225 = pneg %p224
      // Predicated region
      $region37: #{tpu_custom_call.1} parent=5 // pred_check
        _
      $region38: #{tpu_custom_call.1} parent=5 // pred_check_branch
        %227 = sbr.rel (%p224) target = $region40
      $region39: #{tpu_custom_call.1} parent=5 // pred_region
        %s228 = ssub.s32 %s14, 1
        %s229 = smul.u32 4, %s24
        %p230 = scmp.lt.s32.totalorder %s229, 3
        %s231 = scalar_select %p230, %s229, 3
        %s232 = smul.addr %s231, 3
        %s233 = smul.addr %s232, 8
        %s234 = scalar_lea.vmem %s0, %s233
        %p235 = pneg %p52
        %p236 = pneg %p49
        %p237 = pneg %p73
        %p238 = pneg %p70
        %p239 = scmp.lt.s32.totalorder %s23, 1
        %s240 = scalar_select %p239, %s23, 1
        %s241 = smul.addr %s240, 16
        %s242 = smul.addr %s241, 4
        %s243 = scalar_lea.vmem %s2, %s242
        %p244 = pneg %p99
        %p245 = pneg %p96
        %p246 = scmp.lt.s32.totalorder %s23, 1
        %s247 = scalar_select %p246, %s23, 1
        %s248 = smul.addr %s247, 4
        %s249 = scalar_lea.vmem %s3, %s248
        %p250 = pneg %p125
        %p251 = pneg %p122
        %p252 = pneg %p146
        %p253 = pneg %p143
        %p254 = pneg %p172
        %p255 = pneg %p169
        %s256 = sand.u32 %s159, 1
        %s257 = scalar_lea.sflag [#allocation6], %s256
        %s258 = sand.u32 %s159, 1
        %s259 = smul.addr %s258, 2
        %s260 = scalar_lea.vmem [#allocation5], %s259
        %s261 = smul.u32 4, %s24
        %p262 = scmp.lt.s32.totalorder %s261, 3
        %s263 = scalar_select %p262, %s261, 3
        %s264 = smul.addr %s263, 3
        %s265 = smul.addr %s264, 8
        %s266 = scalar_lea.vmem %s0, %s265
        %s267 = smul.u32 4, %s24
        %p268 = scmp.lt.s32.totalorder %s23, 1
        %s269 = scalar_select %p268, %s23, 1
        %s270 = smul.addr %s269, 16
        %s271 = smul.addr %s270, 4
        %s272 = scalar_lea.vmem %s2, %s271
        %p273 = scmp.lt.s32.totalorder %s23, 1
        %s274 = scalar_select %p273, %s23, 1
        %s275 = smul.addr %s274, 4
        %s276 = scalar_lea.vmem %s3, %s275
        %p278 = scmp.eq.s32.totalorder %s23, 0
        %p279 = scmp.eq.s32.totalorder %s24, 0
        %p280 = pnand %p278, %p279
        %p281 = pneg %p280
        // Predicated region
        $region41: #{tpu_custom_call.1} parent=39 // pred_check
          _
        $region42: #{tpu_custom_call.1} parent=39 // pred_check_branch
          %283 = sbr.rel (%p280) target = $region44
        $region43: #{tpu_custom_call.1} parent=39 // pred_region
          %v284 = vld [vmem:[%s1] sm:$0xff]
          %v285 = vld [vmem:[%s1 + $0x8] sm:$0xff]
          %v286 = vld [vmem:[%s1 + $0x10] sm:$0xff]
          %v287 = vld [vmem:[%s1 + $0x18] sm:$0xff]
          %v288 = vld [vmem:[%s1 + $0x20] sm:$0xff]
          %v289 = vld [vmem:[%s1 + $0x28] sm:$0xff]
          %v290 = vld [vmem:[%s1 + $0x30] sm:$0xff]
          %v291 = vld [vmem:[%s1 + $0x38] sm:$0xff]
          %v292 = vld [vmem:[%s1 + $0x40] sm:$0xff]
          %v293 = vld [vmem:[%s1 + $0x48] sm:$0xff]
          %v294 = vld [vmem:[%s1 + $0x50] sm:$0xff]
          %v295 = vld [vmem:[%s1 + $0x58] sm:$0xff]
          %v296 = vld [vmem:[%s1 + $0x60] sm:$0xff]
          %v297 = vld [vmem:[%s1 + $0x68] sm:$0xff]
          %v298 = vld [vmem:[%s1 + $0x70] sm:$0xff]
          %v299 = vld [vmem:[%s1 + $0x78] sm:$0xff]
          %vm300 = vcmask 261120
          %301 = vst.msk [vmem:[#allocation2] sm:$0xff] %vm300, %v284
          %302 = vst.msk [vmem:[#allocation2 + $0x8] sm:$0xff] %vm300, %v285
          %303 = vst.msk [vmem:[#allocation2 + $0x10] sm:$0xff] %vm300, %v286
          %304 = vst.msk [vmem:[#allocation2 + $0x18] sm:$0xff] %vm300, %v287
          %305 = vst.msk [vmem:[#allocation2 + $0x20] sm:$0xff] %vm300, %v288
          %306 = vst.msk [vmem:[#allocation2 + $0x28] sm:$0xff] %vm300, %v289
          %307 = vst.msk [vmem:[#allocation2 + $0x30] sm:$0xff] %vm300, %v290
          %308 = vst.msk [vmem:[#allocation2 + $0x38] sm:$0xff] %vm300, %v291
          %309 = vst.msk [vmem:[#allocation2 + $0x40] sm:$0xff] %vm300, %v292
          %310 = vst.msk [vmem:[#allocation2 + $0x48] sm:$0xff] %vm300, %v293
          %311 = vst.msk [vmem:[#allocation2 + $0x50] sm:$0xff] %vm300, %v294
          %312 = vst.msk [vmem:[#allocation2 + $0x58] sm:$0xff] %vm300, %v295
          %313 = vst.msk [vmem:[#allocation2 + $0x60] sm:$0xff] %vm300, %v296
          %314 = vst.msk [vmem:[#allocation2 + $0x68] sm:$0xff] %vm300, %v297
          %315 = vst.msk [vmem:[#allocation2 + $0x70] sm:$0xff] %vm300, %v298
          %316 = vst.msk [vmem:[#allocation2 + $0x78] sm:$0xff] %vm300, %v299
        $region44: #{tpu_custom_call.1} parent=39 // pred_fallthru
          _
        %v317 = vld [vmem:[%s272] sm:$0xf]
        %v318 = vld [vmem:[%s272 + $0x4] sm:$0xf]
        %v319 = vld [vmem:[%s272 + $0x8] sm:$0xf]
        %v320 = vld [vmem:[%s272 + $0xc] sm:$0xf]
        %v321 = vld [vmem:[%s272 + $0x10] sm:$0xf]
        %v322 = vld [vmem:[%s272 + $0x14] sm:$0xf]
        %v323 = vld [vmem:[%s272 + $0x18] sm:$0xf]
        %v324 = vld [vmem:[%s272 + $0x1c] sm:$0xf]
        %v325 = vld [vmem:[%s272 + $0x20] sm:$0xf]
        %v326 = vld [vmem:[%s272 + $0x24] sm:$0xf]
        %v327 = vld [vmem:[%s272 + $0x28] sm:$0xf]
        %v328 = vld [vmem:[%s272 + $0x2c] sm:$0xf]
        %v329 = vld [vmem:[%s272 + $0x30] sm:$0xf]
        %v330 = vld [vmem:[%s272 + $0x34] sm:$0xf]
        %v331 = vld [vmem:[%s272 + $0x38] sm:$0xf]
        %v332 = vld [vmem:[%s272 + $0x3c] sm:$0xf]
        %v333 = vld [vmem:[%s276] sm:$0x7]
        // Predicated region
        $region45: #{tpu_custom_call.1} parent=39 // pred_check
          %p334 = pneg %p279
        $region46: #{tpu_custom_call.1} parent=39 // pred_check_branch
          %336 = sbr.rel (%p334) target = $region48
        $region47: #{tpu_custom_call.1} parent=39 // pred_region
          %v337 = vld [vmem:[#allocation2] sm:$0xff]
          %v338 = vld [vmem:[#allocation2 + $0x8] sm:$0xff]
          %v339 = vld [vmem:[#allocation2 + $0x10] sm:$0xff]
          %v340 = vld [vmem:[#allocation2 + $0x18] sm:$0xff]
          %v341 = vld [vmem:[#allocation2 + $0x20] sm:$0xff]
          %v342 = vld [vmem:[#allocation2 + $0x28] sm:$0xff]
          %v343 = vld [vmem:[#allocation2 + $0x30] sm:$0xff]
          %v344 = vld [vmem:[#allocation2 + $0x38] sm:$0xff]
          %v345 = vld [vmem:[#allocation2 + $0x40] sm:$0xff]
          %v346 = vld [vmem:[#allocation2 + $0x48] sm:$0xff]
          %v347 = vld [vmem:[#allocation2 + $0x50] sm:$0xff]
          %v348 = vld [vmem:[#allocation2 + $0x58] sm:$0xff]
          %v349 = vld [vmem:[#allocation2 + $0x60] sm:$0xff]
          %v350 = vld [vmem:[#allocation2 + $0x68] sm:$0xff]
          %v351 = vld [vmem:[#allocation2 + $0x70] sm:$0xff]
          %v352 = vld [vmem:[#allocation2 + $0x78] sm:$0xff]
          %v353 = vpack.c.bf16 %v338, %v337
          %v354 = vpack.c.bf16 %v340, %v339
          %v355 = vpack.c.bf16 %v342, %v341
          %v356 = vpack.c.bf16 %v344, %v343
          %v357 = vpack.c.bf16 %v346, %v345
          %v358 = vpack.c.bf16 %v348, %v347
          %v359 = vpack.c.bf16 %v350, %v349
          %v360 = vpack.c.bf16 %v352, %v351
          %v365 = vunpack.c.l.b16 %v321
          %v366 = vunpack.c.l.b16 %v322
          %v367 = vunpack.c.l.b16 %v323
          %v368 = vunpack.c.l.b16 %v324
          %v369 = vpack.c.b16 %v366, %v365
          %v370 = vpack.c.b16 %v368, %v367
          %vm373 = vcmask 261120
          %v375 = vsel %vm373, %v353, 0
          %v378 = vsel %vm373, %v354, 0
          %v381 = vsel %vm373, %v355, 0
          %v384 = vsel %vm373, %v356, 0
          %v387 = vsel %vm373, %v357, 0
          %v390 = vsel %vm373, %v358, 0
          %v393 = vsel %vm373, %v359, 0
          %v396 = vsel %vm373, %v360, 0
          %398 = vmatprep.subr.bf16.mxu0 0
          %399 = vmatpush1.bf16.msra.mxu0 %v369
          %400 = vmatprep.subr.bf16.mxu0 0
          %401 = vmatpush1.bf16.msra.mxu0 %v370
          %402 = vmatprep.subr.bf16.mxu0 0
          %403 = vmatpush1.bf16.msra.mxu0 0
          %404 = vmatprep.subr.bf16.mxu0 0
          %405 = vmatpush1.bf16.msra.mxu0 0
          %406 = vmatprep.subr.bf16.mxu0 0
          %407 = vmatpush1.bf16.msra.mxu0 0
          %408 = vmatprep.subr.bf16.mxu0 0
          %409 = vmatpush1.bf16.msra.mxu0 0
          %410 = vmatprep.subr.bf16.mxu0 0
          %411 = vmatpush1.bf16.msra.mxu0 0
          %412 = vmatprep.subr.bf16.mxu0 0
          %413 = vmatpush1.bf16.msra.mxu0 0
          %414 = vmatprep.subr.bf16.mxu0 0
          %415 = vmatpush1.bf16.msra.mxu0 0
          %416 = vmatprep.subr.bf16.mxu0 0
          %417 = vmatpush1.bf16.msra.mxu0 0
          %418 = vmatprep.subr.bf16.mxu0 0
          %419 = vmatpush1.bf16.msra.mxu0 0
          %420 = vmatprep.subr.bf16.mxu0 0
          %421 = vmatpush1.bf16.msra.mxu0 0
          %422 = vmatprep.subr.bf16.mxu0 0
          %423 = vmatpush1.bf16.msra.mxu0 0
          %424 = vmatprep.subr.bf16.mxu0 0
          %425 = vmatpush1.bf16.msra.mxu0 0
          %426 = vmatprep.subr.bf16.mxu0 0
          %427 = vmatpush1.bf16.msra.mxu0 0
          %428 = vmatprep.subr.bf16.mxu0 0
          %429 = vmatpush1.bf16.msra.mxu0 0
          %430 = vmatprep.mubr.bf16.mxu0 0
          %431 = vmatmul.mubr.bf16.gmra.mrb[0].mxu0 %v375
          %v432 = vpop.f32.mrb[0].mxu0
          %v433 = vadd.f32 0.0, %v432
          %v434 = vpop.f32.mrb[0].mxu0
          %v435 = vpop.f32.mrb[0].mxu0
          %v436 = vadd.f32 0.0, %v435
          %v437 = vpop.f32.mrb[0].mxu0
          %438 = vmatprep.mubr.bf16.mxu0 0
          %439 = vmatmul.mubr.bf16.gmra.mrb[0].mxu0 %v378
          %v440 = vpop.f32.mrb[0].mxu0
          %v441 = vadd.f32 0.0, %v440
          %v442 = vpop.f32.mrb[0].mxu0
          %v443 = vpop.f32.mrb[0].mxu0
          %v444 = vadd.f32 0.0, %v443
          %v445 = vpop.f32.mrb[0].mxu0
          %446 = vmatprep.mubr.bf16.mxu0 0
          %447 = vmatmul.mubr.bf16.gmra.mrb[0].mxu0 %v381
          %v448 = vpop.f32.mrb[0].mxu0
          %v449 = vadd.f32 0.0, %v448
          %v450 = vpop.f32.mrb[0].mxu0
          %v451 = vpop.f32.mrb[0].mxu0
          %v452 = vadd.f32 0.0, %v451
          %v453 = vpop.f32.mrb[0].mxu0
          %454 = vmatprep.mubr.bf16.mxu0 0
          %455 = vmatmul.mubr.bf16.gmra.mrb[0].mxu0 %v384
          %v456 = vpop.f32.mrb[0].mxu0
          %v457 = vadd.f32 0.0, %v456
          %v458 = vpop.f32.mrb[0].mxu0
          %v459 = vpop.f32.mrb[0].mxu0
          %v460 = vadd.f32 0.0, %v459
          %v461 = vpop.f32.mrb[0].mxu0
          %462 = vmatprep.mubr.bf16.mxu0 0
          %463 = vmatmul.mubr.bf16.gmra.mrb[0].mxu0 %v387
          %v464 = vpop.f32.mrb[0].mxu0
          %v465 = vadd.f32 0.0, %v464
          %v466 = vpop.f32.mrb[0].mxu0
          %v467 = vpop.f32.mrb[0].mxu0
          %v468 = vadd.f32 0.0, %v467
          %v469 = vpop.f32.mrb[0].mxu0
          %470 = vmatprep.mubr.bf16.mxu0 0
          %471 = vmatmul.mubr.bf16.gmra.mrb[0].mxu0 %v390
          %v472 = vpop.f32.mrb[0].mxu0
          %v473 = vadd.f32 0.0, %v472
          %v474 = vpop.f32.mrb[0].mxu0
          %v475 = vpop.f32.mrb[0].mxu0
          %v476 = vadd.f32 0.0, %v475
          %v477 = vpop.f32.mrb[0].mxu0
          %478 = vmatprep.mubr.bf16.mxu0 0
          %479 = vmatmul.mubr.bf16.gmra.mrb[0].mxu0 %v393
          %v480 = vpop.f32.mrb[0].mxu0
          %v481 = vadd.f32 0.0, %v480
          %v482 = vpop.f32.mrb[0].mxu0
          %v483 = vpop.f32.mrb[0].mxu0
          %v484 = vadd.f32 0.0, %v483
          %v485 = vpop.f32.mrb[0].mxu0
          %486 = vmatprep.mubr.bf16.mxu0 0
          %487 = vmatmul.mubr.bf16.gmra.mrb[0].mxu0 %v396
          %v488 = vpop.f32.mrb[0].mxu0
          %v489 = vadd.f32 0.0, %v488
          %v490 = vpop.f32.mrb[0].mxu0
          %v491 = vpop.f32.mrb[0].mxu0
          %v492 = vadd.f32 0.0, %v491
          %v493 = vpop.f32.mrb[0].mxu0
          %494 = vdwg.mxu0
          %v495 = vpack.c.bf16 %v436, %v433
          %v496 = vpack.c.bf16 %v444, %v441
          %v497 = vpack.c.bf16 %v452, %v449
          %v498 = vpack.c.bf16 %v460, %v457
          %v499 = vpack.c.bf16 %v468, %v465
          %v500 = vpack.c.bf16 %v476, %v473
          %v501 = vpack.c.bf16 %v484, %v481
          %v502 = vpack.c.bf16 %v492, %v489
          %503 = vst.msk [vmem:[#allocation3] sm:$0xff] %vm373, %v495
          %504 = vst.msk [vmem:[#allocation3 + $0x8] sm:$0xff] %vm373, %v496
          %505 = vst.msk [vmem:[#allocation3 + $0x10] sm:$0xff] %vm373, %v497
          %506 = vst.msk [vmem:[#allocation3 + $0x18] sm:$0xff] %vm373, %v498
          %507 = vst.msk [vmem:[#allocation3 + $0x20] sm:$0xff] %vm373, %v499
          %508 = vst.msk [vmem:[#allocation3 + $0x28] sm:$0xff] %vm373, %v500
          %509 = vst.msk [vmem:[#allocation3 + $0x30] sm:$0xff] %vm373, %v501
          %510 = vst.msk [vmem:[#allocation3 + $0x38] sm:$0xff] %vm373, %v502
          %v515 = vunpack.c.l.b16 %v325
          %v516 = vunpack.c.l.b16 %v326
          %v517 = vunpack.c.l.b16 %v327
          %v518 = vunpack.c.l.b16 %v328
          %v519 = vpack.c.b16 %v516, %v515
          %v520 = vpack.c.b16 %v518, %v517
          %523 = vmatprep.subr.bf16.mxu0 0
          %524 = vmatpush1.bf16.msra.mxu0 %v519
          %525 = vmatprep.subr.bf16.mxu0 0
          %526 = vmatpush1.bf16.msra.mxu0 %v520
          %527 = vmatprep.subr.bf16.mxu0 0
          %528 = vmatpush1.bf16.msra.mxu0 0
          %529 = vmatprep.subr.bf16.mxu0 0
          %530 = vmatpush1.bf16.msra.mxu0 0
          %531 = vmatprep.subr.bf16.mxu0 0
          %532 = vmatpush1.bf16.msra.mxu0 0
          %533 = vmatprep.subr.bf16.mxu0 0
          %534 = vmatpush1.bf16.msra.mxu0 0
          %535 = vmatprep.subr.bf16.mxu0 0
          %536 = vmatpush1.bf16.msra.mxu0 0
          %537 = vmatprep.subr.bf16.mxu0 0
          %538 = vmatpush1.bf16.msra.mxu0 0
          %539 = vmatprep.subr.bf16.mxu0 0
          %540 = vmatpush1.bf16.msra.mxu0 0
          %541 = vmatprep.subr.bf16.mxu0 0
          %542 = vmatpush1.bf16.msra.mxu0 0
          %543 = vmatprep.subr.bf16.mxu0 0
          %544 = vmatpush1.bf16.msra.mxu0 0
          %545 = vmatprep.subr.bf16.mxu0 0
          %546 = vmatpush1.bf16.msra.mxu0 0
          %547 = vmatprep.subr.bf16.mxu0 0
          %548 = vmatpush1.bf16.msra.mxu0 0
          %549 = vmatprep.subr.bf16.mxu0 0
          %550 = vmatpush1.bf16.msra.mxu0 0
          %551 = vmatprep.subr.bf16.mxu0 0
          %552 = vmatpush1.bf16.msra.mxu0 0
          %553 = vmatprep.subr.bf16.mxu0 0
          %554 = vmatpush1.bf16.msra.mxu0 0
          %555 = vmatprep.mubr.bf16.mxu0 0
          %556 = vmatmul.mubr.bf16.gmra.mrb[0].mxu0 %v375
          %v557 = vpop.f32.mrb[0].mxu0
          %v558 = vadd.f32 0.0, %v557
          %v559 = vpop.f32.mrb[0].mxu0
          %v560 = vpop.f32.mrb[0].mxu0
          %v561 = vadd.f32 0.0, %v560
          %v562 = vpop.f32.mrb[0].mxu0
          %563 = vmatprep.mubr.bf16.mxu0 0
          %564 = vmatmul.mubr.bf16.gmra.mrb[0].mxu0 %v378
          %v565 = vpop.f32.mrb[0].mxu0
          %v566 = vadd.f32 0.0, %v565
          %v567 = vpop.f32.mrb[0].mxu0
          %v568 = vpop.f32.mrb[0].mxu0
          %v569 = vadd.f32 0.0, %v568
          %v570 = vpop.f32.mrb[0].mxu0
          %571 = vmatprep.mubr.bf16.mxu0 0
          %572 = vmatmul.mubr.bf16.gmra.mrb[0].mxu0 %v381
          %v573 = vpop.f32.mrb[0].mxu0
          %v574 = vadd.f32 0.0, %v573
          %v575 = vpop.f32.mrb[0].mxu0
          %v576 = vpop.f32.mrb[0].mxu0
          %v577 = vadd.f32 0.0, %v576
          %v578 = vpop.f32.mrb[0].mxu0
          %579 = vmatprep.mubr.bf16.mxu0 0
          %580 = vmatmul.mubr.bf16.gmra.mrb[0].mxu0 %v384
          %v581 = vpop.f32.mrb[0].mxu0
          %v582 = vadd.f32 0.0, %v581
          %v583 = vpop.f32.mrb[0].mxu0
          %v584 = vpop.f32.mrb[0].mxu0
          %v585 = vadd.f32 0.0, %v584
          %v586 = vpop.f32.mrb[0].mxu0
          %587 = vmatprep.mubr.bf16.mxu0 0
          %588 = vmatmul.mubr.bf16.gmra.mrb[0].mxu0 %v387
          %v589 = vpop.f32.mrb[0].mxu0
          %v590 = vadd.f32 0.0, %v589
          %v591 = vpop.f32.mrb[0].mxu0
          %v592 = vpop.f32.mrb[0].mxu0
          %v593 = vadd.f32 0.0, %v592
          %v594 = vpop.f32.mrb[0].mxu0
          %595 = vmatprep.mubr.bf16.mxu0 0
          %596 = vmatmul.mubr.bf16.gmra.mrb[0].mxu0 %v390
          %v597 = vpop.f32.mrb[0].mxu0
          %v598 = vadd.f32 0.0, %v597
          %v599 = vpop.f32.mrb[0].mxu0
          %v600 = vpop.f32.mrb[0].mxu0
          %v601 = vadd.f32 0.0, %v600
          %v602 = vpop.f32.mrb[0].mxu0
          %603 = vmatprep.mubr.bf16.mxu0 0
          %604 = vmatmul.mubr.bf16.gmra.mrb[0].mxu0 %v393
          %v605 = vpop.f32.mrb[0].mxu0
          %v606 = vadd.f32 0.0, %v605
          %v607 = vpop.f32.mrb[0].mxu0
          %v608 = vpop.f32.mrb[0].mxu0
          %v609 = vadd.f32 0.0, %v608
          %v610 = vpop.f32.mrb[0].mxu0
          %611 = vmatprep.mubr.bf16.mxu0 0
          %612 = vmatmul.mubr.bf16.gmra.mrb[0].mxu0 %v396
          %v613 = vpop.f32.mrb[0].mxu0
          %v614 = vadd.f32 0.0, %v613
          %v615 = vpop.f32.mrb[0].mxu0
          %v616 = vpop.f32.mrb[0].mxu0
          %v617 = vadd.f32 0.0, %v616
          %v618 = vpop.f32.mrb[0].mxu0
          %619 = vdwg.mxu0
          %v620 = vpack.c.bf16 %v561, %v558
          %v621 = vpack.c.bf16 %v569, %v566
          %v622 = vpack.c.bf16 %v577, %v574
          %v623 = vpack.c.bf16 %v585, %v582
          %v624 = vpack.c.bf16 %v593, %v590
          %v625 = vpack.c.bf16 %v601, %v598
          %v626 = vpack.c.bf16 %v609, %v606
          %v627 = vpack.c.bf16 %v617, %v614
          %628 = vst.msk [vmem:[#allocation3 + $0x40] sm:$0xff] %vm373, %v620
          %629 = vst.msk [vmem:[#allocation3 + $0x48] sm:$0xff] %vm373, %v621
          %630 = vst.msk [vmem:[#allocation3 + $0x50] sm:$0xff] %vm373, %v622
          %631 = vst.msk [vmem:[#allocation3 + $0x58] sm:$0xff] %vm373, %v623
          %632 = vst.msk [vmem:[#allocation3 + $0x60] sm:$0xff] %vm373, %v624
          %633 = vst.msk [vmem:[#allocation3 + $0x68] sm:$0xff] %vm373, %v625
          %634 = vst.msk [vmem:[#allocation3 + $0x70] sm:$0xff] %vm373, %v626
          %635 = vst.msk [vmem:[#allocation3 + $0x78] sm:$0xff] %vm373, %v627
          %v640 = vunpack.c.l.b16 %v329
          %v641 = vunpack.c.l.b16 %v330
          %v642 = vunpack.c.l.b16 %v331
          %v643 = vunpack.c.l.b16 %v332
          %v644 = vpack.c.b16 %v641, %v640
          %v645 = vpack.c.b16 %v643, %v642
          %648 = vmatprep.subr.bf16.mxu0 0
          %649 = vmatpush1.bf16.msra.mxu0 %v644
          %650 = vmatprep.subr.bf16.mxu0 0
          %651 = vmatpush1.bf16.msra.mxu0 %v645
          %652 = vmatprep.subr.bf16.mxu0 0
          %653 = vmatpush1.bf16.msra.mxu0 0
          %654 = vmatprep.subr.bf16.mxu0 0
          %655 = vmatpush1.bf16.msra.mxu0 0
          %656 = vmatprep.subr.bf16.mxu0 0
          %657 = vmatpush1.bf16.msra.mxu0 0
          %658 = vmatprep.subr.bf16.mxu0 0
          %659 = vmatpush1.bf16.msra.mxu0 0
          %660 = vmatprep.subr.bf16.mxu0 0
          %661 = vmatpush1.bf16.msra.mxu0 0
          %662 = vmatprep.subr.bf16.mxu0 0
          %663 = vmatpush1.bf16.msra.mxu0 0
          %664 = vmatprep.subr.bf16.mxu0 0
          %665 = vmatpush1.bf16.msra.mxu0 0
          %666 = vmatprep.subr.bf16.mxu0 0
          %667 = vmatpush1.bf16.msra.mxu0 0
          %668 = vmatprep.subr.bf16.mxu0 0
          %669 = vmatpush1.bf16.msra.mxu0 0
          %670 = vmatprep.subr.bf16.mxu0 0
          %671 = vmatpush1.bf16.msra.mxu0 0
          %672 = vmatprep.subr.bf16.mxu0 0
          %673 = vmatpush1.bf16.msra.mxu0 0
          %674 = vmatprep.subr.bf16.mxu0 0
          %675 = vmatpush1.bf16.msra.mxu0 0
          %676 = vmatprep.subr.bf16.mxu0 0
          %677 = vmatpush1.bf16.msra.mxu0 0
          %678 = vmatprep.subr.bf16.mxu0 0
          %679 = vmatpush1.bf16.msra.mxu0 0
          %680 = vmatprep.mubr.bf16.mxu0 0
          %681 = vmatmul.mubr.bf16.gmra.mrb[0].mxu0 %v375
          %v682 = vpop.f32.mrb[0].mxu0
          %v683 = vadd.f32 0.0, %v682
          %v684 = vpop.f32.mrb[0].mxu0
          %v685 = vpop.f32.mrb[0].mxu0
          %v686 = vadd.f32 0.0, %v685
          %v687 = vpop.f32.mrb[0].mxu0
          %688 = vmatprep.mubr.bf16.mxu0 0
          %689 = vmatmul.mubr.bf16.gmra.mrb[0].mxu0 %v378
          %v690 = vpop.f32.mrb[0].mxu0
          %v691 = vadd.f32 0.0, %v690
          %v692 = vpop.f32.mrb[0].mxu0
          %v693 = vpop.f32.mrb[0].mxu0
          %v694 = vadd.f32 0.0, %v693
          %v695 = vpop.f32.mrb[0].mxu0
          %696 = vmatprep.mubr.bf16.mxu0 0
          %697 = vmatmul.mubr.bf16.gmra.mrb[0].mxu0 %v381
          %v698 = vpop.f32.mrb[0].mxu0
          %v699 = vadd.f32 0.0, %v698
          %v700 = vpop.f32.mrb[0].mxu0
          %v701 = vpop.f32.mrb[0].mxu0
          %v702 = vadd.f32 0.0, %v701
          %v703 = vpop.f32.mrb[0].mxu0
          %704 = vmatprep.mubr.bf16.mxu0 0
          %705 = vmatmul.mubr.bf16.gmra.mrb[0].mxu0 %v384
          %v706 = vpop.f32.mrb[0].mxu0
          %v707 = vadd.f32 0.0, %v706
          %v708 = vpop.f32.mrb[0].mxu0
          %v709 = vpop.f32.mrb[0].mxu0
          %v710 = vadd.f32 0.0, %v709
          %v711 = vpop.f32.mrb[0].mxu0
          %712 = vmatprep.mubr.bf16.mxu0 0
          %713 = vmatmul.mubr.bf16.gmra.mrb[0].mxu0 %v387
          %v714 = vpop.f32.mrb[0].mxu0
          %v715 = vadd.f32 0.0, %v714
          %v716 = vpop.f32.mrb[0].mxu0
          %v717 = vpop.f32.mrb[0].mxu0
          %v718 = vadd.f32 0.0, %v717
          %v719 = vpop.f32.mrb[0].mxu0
          %720 = vmatprep.mubr.bf16.mxu0 0
          %721 = vmatmul.mubr.bf16.gmra.mrb[0].mxu0 %v390
          %v722 = vpop.f32.mrb[0].mxu0
          %v723 = vadd.f32 0.0, %v722
          %v724 = vpop.f32.mrb[0].mxu0
          %v725 = vpop.f32.mrb[0].mxu0
          %v726 = vadd.f32 0.0, %v725
          %v727 = vpop.f32.mrb[0].mxu0
          %728 = vmatprep.mubr.bf16.mxu0 0
          %729 = vmatmul.mubr.bf16.gmra.mrb[0].mxu0 %v393
          %v730 = vpop.f32.mrb[0].mxu0
          %v731 = vadd.f32 0.0, %v730
          %v732 = vpop.f32.mrb[0].mxu0
          %v733 = vpop.f32.mrb[0].mxu0
          %v734 = vadd.f32 0.0, %v733
          %v735 = vpop.f32.mrb[0].mxu0
          %736 = vmatprep.mubr.bf16.mxu0 0
          %737 = vmatmul.mubr.bf16.gmra.mrb[0].mxu0 %v396
          %v738 = vpop.f32.mrb[0].mxu0
          %v739 = vadd.f32 0.0, %v738
          %v740 = vpop.f32.mrb[0].mxu0
          %v741 = vpop.f32.mrb[0].mxu0
          %v742 = vadd.f32 0.0, %v741
          %v743 = vpop.f32.mrb[0].mxu0
          %744 = vdwg.mxu0
          %v745 = vpack.c.bf16 %v686, %v683
          %v746 = vpack.c.bf16 %v694, %v691
          %v747 = vpack.c.bf16 %v702, %v699
          %v748 = vpack.c.bf16 %v710, %v707
          %v749 = vpack.c.bf16 %v718, %v715
          %v750 = vpack.c.bf16 %v726, %v723
          %v751 = vpack.c.bf16 %v734, %v731
          %v752 = vpack.c.bf16 %v742, %v739
          %753 = vst.msk [vmem:[#allocation3 + $0x80] sm:$0xff] %vm373, %v745
          %754 = vst.msk [vmem:[#allocation3 + $0x88] sm:$0xff] %vm373, %v746
          %755 = vst.msk [vmem:[#allocation3 + $0x90] sm:$0xff] %vm373, %v747
          %756 = vst.msk [vmem:[#allocation3 + $0x98] sm:$0xff] %vm373, %v748
          %757 = vst.msk [vmem:[#allocation3 + $0xa0] sm:$0xff] %vm373, %v749
          %758 = vst.msk [vmem:[#allocation3 + $0xa8] sm:$0xff] %vm373, %v750
          %759 = vst.msk [vmem:[#allocation3 + $0xb0] sm:$0xff] %vm373, %v751
          %760 = vst.msk [vmem:[#allocation3 + $0xb8] sm:$0xff] %vm373, %v752
        $region48: #{tpu_custom_call.1} parent=39 // pred_fallthru
          _
        %s761 = smul.u32 %s24, 128
        %v762 = vld [vmem:[%s266] sm:$0xff]
        %v763 = vld [vmem:[%s266 + $0x8] sm:$0xff]
        %v764 = vld [vmem:[%s266 + $0x10] sm:$0xff]
        %v765 = vld [vmem:[%s266 + $0x18] sm:$0xff]
        %v766 = vld [vmem:[%s266 + $0x20] sm:$0xff]
        %v767 = vld [vmem:[%s266 + $0x28] sm:$0xff]
        %v768 = vld [vmem:[%s266 + $0x30] sm:$0xff]
        %v769 = vld [vmem:[%s266 + $0x38] sm:$0xff]
        %v770 = vld [vmem:[%s266 + $0x40] sm:$0xff]
        %v771 = vld [vmem:[%s266 + $0x48] sm:$0xff]
        %v772 = vld [vmem:[%s266 + $0x50] sm:$0xff]
        %v773 = vld [vmem:[%s266 + $0x58] sm:$0xff]
        %v774 = vunpack.c.l.s8.bf16 %v762
        %v775 = vunpack.c.l.s8.bf16 %v763
        %v776 = vunpack.c.l.s8.bf16 %v764
        %v777 = vunpack.c.h.s8.bf16 %v762
        %v778 = vunpack.c.h.s8.bf16 %v763
        %v779 = vunpack.c.h.s8.bf16 %v764
        %v780 = vunpack.c.l.s8.bf16 %v765
        %v781 = vunpack.c.l.s8.bf16 %v766
        %v782 = vunpack.c.l.s8.bf16 %v767
        %v783 = vunpack.c.h.s8.bf16 %v765
        %v784 = vunpack.c.h.s8.bf16 %v766
        %v785 = vunpack.c.h.s8.bf16 %v767
        %v786 = vunpack.c.l.s8.bf16 %v768
        %v787 = vunpack.c.l.s8.bf16 %v769
        %v788 = vunpack.c.l.s8.bf16 %v770
        %v789 = vunpack.c.h.s8.bf16 %v768
        %v790 = vunpack.c.h.s8.bf16 %v769
        %v791 = vunpack.c.h.s8.bf16 %v770
        %v792 = vunpack.c.l.s8.bf16 %v771
        %v793 = vunpack.c.l.s8.bf16 %v772
        %v794 = vunpack.c.l.s8.bf16 %v773
        %v795 = vunpack.c.h.s8.bf16 %v771
        %v796 = vunpack.c.h.s8.bf16 %v772
        %v797 = vunpack.c.h.s8.bf16 %v773
        %v798 = vld [vmem:[#allocation3] sm:$0xff]
        %v799 = vld [vmem:[#allocation3 + $0x8] sm:$0xff]
        %v800 = vld [vmem:[#allocation3 + $0x10] sm:$0xff]
        %v801 = vld [vmem:[#allocation3 + $0x18] sm:$0xff]
        %v802 = vld [vmem:[#allocation3 + $0x20] sm:$0xff]
        %v803 = vld [vmem:[#allocation3 + $0x28] sm:$0xff]
        %v804 = vld [vmem:[#allocation3 + $0x30] sm:$0xff]
        %v805 = vld [vmem:[#allocation3 + $0x38] sm:$0xff]
        %v806 = vld [vmem:[#allocation3 + $0x40] sm:$0xff]
        %v807 = vld [vmem:[#allocation3 + $0x48] sm:$0xff]
        %v808 = vld [vmem:[#allocation3 + $0x50] sm:$0xff]
        %v809 = vld [vmem:[#allocation3 + $0x58] sm:$0xff]
        %v810 = vld [vmem:[#allocation3 + $0x60] sm:$0xff]
        %v811 = vld [vmem:[#allocation3 + $0x68] sm:$0xff]
        %v812 = vld [vmem:[#allocation3 + $0x70] sm:$0xff]
        %v813 = vld [vmem:[#allocation3 + $0x78] sm:$0xff]
        %v814 = vld [vmem:[#allocation3 + $0x80] sm:$0xff]
        %v815 = vld [vmem:[#allocation3 + $0x88] sm:$0xff]
        %v816 = vld [vmem:[#allocation3 + $0x90] sm:$0xff]
        %v817 = vld [vmem:[#allocation3 + $0x98] sm:$0xff]
        %v818 = vld [vmem:[#allocation3 + $0xa0] sm:$0xff]
        %v819 = vld [vmem:[#allocation3 + $0xa8] sm:$0xff]
        %v820 = vld [vmem:[#allocation3 + $0xb0] sm:$0xff]
        %v821 = vld [vmem:[#allocation3 + $0xb8] sm:$0xff]
        %s822 = scalar_lea.vmem [#allocation2], %s761
        %v823 = vld [vmem:[%s822] sm:$0xff]
        %v824 = vld [vmem:[%s822 + $0x8] sm:$0xff]
        %v825 = vld [vmem:[%s822 + $0x10] sm:$0xff]
        %v826 = vld [vmem:[%s822 + $0x18] sm:$0xff]
        %v827 = vld [vmem:[%s822 + $0x20] sm:$0xff]
        %v828 = vld [vmem:[%s822 + $0x28] sm:$0xff]
        %v829 = vld [vmem:[%s822 + $0x30] sm:$0xff]
        %v830 = vld [vmem:[%s822 + $0x38] sm:$0xff]
        %v831 = vld [vmem:[%s822 + $0x40] sm:$0xff]
        %v832 = vld [vmem:[%s822 + $0x48] sm:$0xff]
        %v833 = vld [vmem:[%s822 + $0x50] sm:$0xff]
        %v834 = vld [vmem:[%s822 + $0x58] sm:$0xff]
        %v835 = vld [vmem:[%s822 + $0x60] sm:$0xff]
        %v836 = vld [vmem:[%s822 + $0x68] sm:$0xff]
        %v837 = vld [vmem:[%s822 + $0x70] sm:$0xff]
        %v838 = vld [vmem:[%s822 + $0x78] sm:$0xff]
        %v839 = vpack.c.bf16 %v824, %v823
        %v840 = vpack.c.bf16 %v826, %v825
        %v841 = vpack.c.bf16 %v828, %v827
        %v842 = vpack.c.bf16 %v830, %v829
        %v843 = vpack.c.bf16 %v832, %v831
        %v844 = vpack.c.bf16 %v834, %v833
        %v845 = vpack.c.bf16 %v836, %v835
        %v846 = vpack.c.bf16 %v838, %v837
        %v851 = vunpack.c.l.b16 %v317
        %v852 = vunpack.c.l.b16 %v318
        %v853 = vunpack.c.l.b16 %v319
        %v854 = vunpack.c.l.b16 %v320
        %v855 = vpack.c.b16 %v852, %v851
        %v856 = vpack.c.b16 %v854, %v853
        %vm859 = vcmask 261120
        %v861 = vsel %vm859, %v839, 0
        %v864 = vsel %vm859, %v840, 0
        %v867 = vsel %vm859, %v841, 0
        %v870 = vsel %vm859, %v842, 0
        %v873 = vsel %vm859, %v843, 0
        %v876 = vsel %vm859, %v844, 0
        %v879 = vsel %vm859, %v845, 0
        %v882 = vsel %vm859, %v846, 0
        %884 = vmatprep.subr.bf16.mxu0 0
        %885 = vmatpush1.bf16.msra.mxu0 %v855
        %886 = vmatprep.subr.bf16.mxu0 0
        %887 = vmatpush1.bf16.msra.mxu0 %v856
        %888 = vmatprep.subr.bf16.mxu0 0
        %889 = vmatpush1.bf16.msra.mxu0 0
        %890 = vmatprep.subr.bf16.mxu0 0
        %891 = vmatpush1.bf16.msra.mxu0 0
        %892 = vmatprep.subr.bf16.mxu0 0
        %893 = vmatpush1.bf16.msra.mxu0 0
        %894 = vmatprep.subr.bf16.mxu0 0
        %895 = vmatpush1.bf16.msra.mxu0 0
        %896 = vmatprep.subr.bf16.mxu0 0
        %897 = vmatpush1.bf16.msra.mxu0 0
        %898 = vmatprep.subr.bf16.mxu0 0
        %899 = vmatpush1.bf16.msra.mxu0 0
        %900 = vmatprep.subr.bf16.mxu0 0
        %901 = vmatpush1.bf16.msra.mxu0 0
        %902 = vmatprep.subr.bf16.mxu0 0
        %903 = vmatpush1.bf16.msra.mxu0 0
        %904 = vmatprep.subr.bf16.mxu0 0
        %905 = vmatpush1.bf16.msra.mxu0 0
        %906 = vmatprep.subr.bf16.mxu0 0
        %907 = vmatpush1.bf16.msra.mxu0 0
        %908 = vmatprep.subr.bf16.mxu0 0
        %909 = vmatpush1.bf16.msra.mxu0 0
        %910 = vmatprep.subr.bf16.mxu0 0
        %911 = vmatpush1.bf16.msra.mxu0 0
        %912 = vmatprep.subr.bf16.mxu0 0
        %913 = vmatpush1.bf16.msra.mxu0 0
        %914 = vmatprep.subr.bf16.mxu0 0
        %915 = vmatpush1.bf16.msra.mxu0 0
        %916 = vmatprep.mubr.bf16.mxu0 0
        %917 = vmatmul.mubr.bf16.gmra.mrb[0].mxu0 %v861
        %v918 = vpop.f32.mrb[0].mxu0
        %v919 = vadd.f32 0.0, %v918
        %v920 = vpop.f32.mrb[0].mxu0
        %v921 = vpop.f32.mrb[0].mxu0
        %v922 = vadd.f32 0.0, %v921
        %v923 = vpop.f32.mrb[0].mxu0
        %924 = vmatprep.mubr.bf16.mxu0 0
        %925 = vmatmul.mubr.bf16.gmra.mrb[0].mxu0 %v864
        %v926 = vpop.f32.mrb[0].mxu0
        %v927 = vadd.f32 0.0, %v926
        %v928 = vpop.f32.mrb[0].mxu0
        %v929 = vpop.f32.mrb[0].mxu0
        %v930 = vadd.f32 0.0, %v929
        %v931 = vpop.f32.mrb[0].mxu0
        %932 = vmatprep.mubr.bf16.mxu0 0
        %933 = vmatmul.mubr.bf16.gmra.mrb[0].mxu0 %v867
        %v934 = vpop.f32.mrb[0].mxu0
        %v935 = vadd.f32 0.0, %v934
        %v936 = vpop.f32.mrb[0].mxu0
        %v937 = vpop.f32.mrb[0].mxu0
        %v938 = vadd.f32 0.0, %v937
        %v939 = vpop.f32.mrb[0].mxu0
        %940 = vmatprep.mubr.bf16.mxu0 0
        %941 = vmatmul.mubr.bf16.gmra.mrb[0].mxu0 %v870
        %v942 = vpop.f32.mrb[0].mxu0
        %v943 = vadd.f32 0.0, %v942
        %v944 = vpop.f32.mrb[0].mxu0
        %v945 = vpop.f32.mrb[0].mxu0
        %v946 = vadd.f32 0.0, %v945
        %v947 = vpop.f32.mrb[0].mxu0
        %948 = vmatprep.mubr.bf16.mxu0 0
        %949 = vmatmul.mubr.bf16.gmra.mrb[0].mxu0 %v873
        %v950 = vpop.f32.mrb[0].mxu0
        %v951 = vadd.f32 0.0, %v950
        %v952 = vpop.f32.mrb[0].mxu0
        %v953 = vpop.f32.mrb[0].mxu0
        %v954 = vadd.f32 0.0, %v953
        %v955 = vpop.f32.mrb[0].mxu0
        %956 = vmatprep.mubr.bf16.mxu0 0
        %957 = vmatmul.mubr.bf16.gmra.mrb[0].mxu0 %v876
        %v958 = vpop.f32.mrb[0].mxu0
        %v959 = vadd.f32 0.0, %v958
        %v960 = vpop.f32.mrb[0].mxu0
        %v961 = vpop.f32.mrb[0].mxu0
        %v962 = vadd.f32 0.0, %v961
        %v963 = vpop.f32.mrb[0].mxu0
        %964 = vmatprep.mubr.bf16.mxu0 0
        %965 = vmatmul.mubr.bf16.gmra.mrb[0].mxu0 %v879
        %v966 = vpop.f32.mrb[0].mxu0
        %v967 = vadd.f32 0.0, %v966
        %v968 = vpop.f32.mrb[0].mxu0
        %v969 = vpop.f32.mrb[0].mxu0
        %v970 = vadd.f32 0.0, %v969
        %v971 = vpop.f32.mrb[0].mxu0
        %972 = vmatprep.mubr.bf16.mxu0 0
        %973 = vmatmul.mubr.bf16.gmra.mrb[0].mxu0 %v882
        %v974 = vpop.f32.mrb[0].mxu0
        %v975 = vadd.f32 0.0, %v974
        %v976 = vpop.f32.mrb[0].mxu0
        %v977 = vpop.f32.mrb[0].mxu0
        %v978 = vadd.f32 0.0, %v977
        %v979 = vpop.f32.mrb[0].mxu0
        %980 = vdwg.mxu0
        %981 = vmatprep.subr.bf16.mxu0 0
        %982 = vmatpush1.bf16.msra.mxu0 %v798
        %983 = vmatprep.subr.bf16.mxu0 0
        %984 = vmatpush1.bf16.msra.mxu0 %v799
        %985 = vmatprep.subr.bf16.mxu0 0
        %986 = vmatpush1.bf16.msra.mxu0 %v800
        %987 = vmatprep.subr.bf16.mxu0 0
        %988 = vmatpush1.bf16.msra.mxu0 %v801
        %989 = vmatprep.subr.bf16.mxu0 0
        %990 = vmatpush1.bf16.msra.mxu0 %v802
        %991 = vmatprep.subr.bf16.mxu0 0
        %992 = vmatpush1.bf16.msra.mxu0 %v803
        %993 = vmatprep.subr.bf16.mxu0 0
        %994 = vmatpush1.bf16.msra.mxu0 %v804
        %995 = vmatprep.subr.bf16.mxu0 0
        %996 = vmatpush1.bf16.msra.mxu0 %v805
        %997 = vmatprep.subr.bf16.mxu0 0
        %998 = vmatpush1.bf16.msra.mxu0 %v806
        %999 = vmatprep.subr.bf16.mxu0 0
        %1000 = vmatpush1.bf16.msra.mxu0 %v807
        %1001 = vmatprep.subr.bf16.mxu0 0
        %1002 = vmatpush1.bf16.msra.mxu0 %v808
        %1003 = vmatprep.subr.bf16.mxu0 0
        %1004 = vmatpush1.bf16.msra.mxu0 %v809
        %1005 = vmatprep.subr.bf16.mxu0 0
        %1006 = vmatpush1.bf16.msra.mxu0 %v810
        %1007 = vmatprep.subr.bf16.mxu0 0
        %1008 = vmatpush1.bf16.msra.mxu0 %v811
        %1009 = vmatprep.subr.bf16.mxu0 0
        %1010 = vmatpush1.bf16.msra.mxu0 %v812
        %1011 = vmatprep.subr.bf16.mxu0 0
        %1012 = vmatpush1.bf16.msra.mxu0 %v813
        %1013 = vmatprep.mubr.bf16.mxu0 %v775
        %1014 = vmatmul.mubr.bf16.gmra.mrb[0].mxu0 %v774
        %v1015 = vpop.f32.mrb[0].mxu0
        %v1016 = vadd.f32 %v919, %v1015
        %v1017 = vpop.f32.mrb[0].mxu0
        %v1018 = vpop.f32.mrb[0].mxu0
        %v1019 = vadd.f32 %v922, %v1018
        %v1020 = vpop.f32.mrb[0].mxu0
        %1021 = vmatprep.mubr.bf16.mxu0 %v778
        %1022 = vmatmul.mubr.bf16.gmra.mrb[0].mxu0 %v777
        %v1023 = vpop.f32.mrb[0].mxu0
        %v1024 = vadd.f32 %v927, %v1023
        %v1025 = vpop.f32.mrb[0].mxu0
        %v1026 = vpop.f32.mrb[0].mxu0
        %v1027 = vadd.f32 %v930, %v1026
        %v1028 = vpop.f32.mrb[0].mxu0
        %1029 = vmatprep.mubr.bf16.mxu0 %v781
        %1030 = vmatmul.mubr.bf16.gmra.mrb[0].mxu0 %v780
        %v1031 = vpop.f32.mrb[0].mxu0
        %v1032 = vadd.f32 %v935, %v1031
        %v1033 = vpop.f32.mrb[0].mxu0
        %v1034 = vpop.f32.mrb[0].mxu0
        %v1035 = vadd.f32 %v938, %v1034
        %v1036 = vpop.f32.mrb[0].mxu0
        %1037 = vmatprep.mubr.bf16.mxu0 %v784
        %1038 = vmatmul.mubr.bf16.gmra.mrb[0].mxu0 %v783
        %v1039 = vpop.f32.mrb[0].mxu0
        %v1040 = vadd.f32 %v943, %v1039
        %v1041 = vpop.f32.mrb[0].mxu0
        %v1042 = vpop.f32.mrb[0].mxu0
        %v1043 = vadd.f32 %v946, %v1042
        %v1044 = vpop.f32.mrb[0].mxu0
        %1045 = vmatprep.mubr.bf16.mxu0 %v787
        %1046 = vmatmul.mubr.bf16.gmra.mrb[0].mxu0 %v786
        %v1047 = vpop.f32.mrb[0].mxu0
        %v1048 = vadd.f32 %v951, %v1047
        %v1049 = vpop.f32.mrb[0].mxu0
        %v1050 = vpop.f32.mrb[0].mxu0
        %v1051 = vadd.f32 %v954, %v1050
        %v1052 = vpop.f32.mrb[0].mxu0
        %1053 = vmatprep.mubr.bf16.mxu0 %v790
        %1054 = vmatmul.mubr.bf16.gmra.mrb[0].mxu0 %v789
        %v1055 = vpop.f32.mrb[0].mxu0
        %v1056 = vadd.f32 %v959, %v1055
        %v1057 = vpop.f32.mrb[0].mxu0
        %v1058 = vpop.f32.mrb[0].mxu0
        %v1059 = vadd.f32 %v962, %v1058
        %v1060 = vpop.f32.mrb[0].mxu0
        %1061 = vmatprep.mubr.bf16.mxu0 %v793
        %1062 = vmatmul.mubr.bf16.gmra.mrb[0].mxu0 %v792
        %v1063 = vpop.f32.mrb[0].mxu0
        %v1064 = vadd.f32 %v967, %v1063
        %v1065 = vpop.f32.mrb[0].mxu0
        %v1066 = vpop.f32.mrb[0].mxu0
        %v1067 = vadd.f32 %v970, %v1066
        %v1068 = vpop.f32.mrb[0].mxu0
        %1069 = vmatprep.mubr.bf16.mxu0 %v796
        %1070 = vmatmul.mubr.bf16.gmra.mrb[0].mxu0 %v795
        %v1071 = vpop.f32.mrb[0].mxu0
        %v1072 = vadd.f32 %v975, %v1071
        %v1073 = vpop.f32.mrb[0].mxu0
        %v1074 = vpop.f32.mrb[0].mxu0
        %v1075 = vadd.f32 %v978, %v1074
        %v1076 = vpop.f32.mrb[0].mxu0
        %1077 = vdwg.mxu0
        %1078 = vmatprep.subr.bf16.mxu0 0
        %1079 = vmatpush1.bf16.msra.mxu0 %v814
        %1080 = vmatprep.subr.bf16.mxu0 0
        %1081 = vmatpush1.bf16.msra.mxu0 %v815
        %1082 = vmatprep.subr.bf16.mxu0 0
        %1083 = vmatpush1.bf16.msra.mxu0 %v816
        %1084 = vmatprep.subr.bf16.mxu0 0
        %1085 = vmatpush1.bf16.msra.mxu0 %v817
        %1086 = vmatprep.subr.bf16.mxu0 0
        %1087 = vmatpush1.bf16.msra.mxu0 %v818
        %1088 = vmatprep.subr.bf16.mxu0 0
        %1089 = vmatpush1.bf16.msra.mxu0 %v819
        %1090 = vmatprep.subr.bf16.mxu0 0
        %1091 = vmatpush1.bf16.msra.mxu0 %v820
        %1092 = vmatprep.subr.bf16.mxu0 0
        %1093 = vmatpush1.bf16.msra.mxu0 %v821
        %1094 = vmatprep.subr.bf16.mxu0 0
        %1095 = vmatpush1.bf16.msra.mxu0 0
        %1096 = vmatprep.subr.bf16.mxu0 0
        %1097 = vmatpush1.bf16.msra.mxu0 0
        %1098 = vmatprep.subr.bf16.mxu0 0
        %1099 = vmatpush1.bf16.msra.mxu0 0
        %1100 = vmatprep.subr.bf16.mxu0 0
        %1101 = vmatpush1.bf16.msra.mxu0 0
        %1102 = vmatprep.subr.bf16.mxu0 0
        %1103 = vmatpush1.bf16.msra.mxu0 0
        %1104 = vmatprep.subr.bf16.mxu0 0
        %1105 = vmatpush1.bf16.msra.mxu0 0
        %1106 = vmatprep.subr.bf16.mxu0 0
        %1107 = vmatpush1.bf16.msra.mxu0 0
        %1108 = vmatprep.subr.bf16.mxu0 0
        %1109 = vmatpush1.bf16.msra.mxu0 0
        %1110 = vmatprep.mubr.bf16.mxu0 0
        %1111 = vmatmul.mubr.bf16.gmra.mrb[0].mxu0 %v776
        %v1112 = vpop.f32.mrb[0].mxu0
        %v1113 = vadd.f32 %v1016, %v1112
        %v1114 = vpop.f32.mrb[0].mxu0
        %v1115 = vpop.f32.mrb[0].mxu0
        %v1116 = vadd.f32 %v1019, %v1115
        %v1117 = vpop.f32.mrb[0].mxu0
        %1118 = vmatprep.mubr.bf16.mxu0 0
        %1119 = vmatmul.mubr.bf16.gmra.mrb[0].mxu0 %v779
        %v1120 = vpop.f32.mrb[0].mxu0
        %v1121 = vadd.f32 %v1024, %v1120
        %v1122 = vpop.f32.mrb[0].mxu0
        %v1123 = vpop.f32.mrb[0].mxu0
        %v1124 = vadd.f32 %v1027, %v1123
        %v1125 = vpop.f32.mrb[0].mxu0
        %1126 = vmatprep.mubr.bf16.mxu0 0
        %1127 = vmatmul.mubr.bf16.gmra.mrb[0].mxu0 %v782
        %v1128 = vpop.f32.mrb[0].mxu0
        %v1129 = vadd.f32 %v1032, %v1128
        %v1130 = vpop.f32.mrb[0].mxu0
        %v1131 = vpop.f32.mrb[0].mxu0
        %v1132 = vadd.f32 %v1035, %v1131
        %v1133 = vpop.f32.mrb[0].mxu0
        %1134 = vmatprep.mubr.bf16.mxu0 0
        %1135 = vmatmul.mubr.bf16.gmra.mrb[0].mxu0 %v785
        %v1136 = vpop.f32.mrb[0].mxu0
        %v1137 = vadd.f32 %v1040, %v1136
        %v1138 = vpop.f32.mrb[0].mxu0
        %v1139 = vpop.f32.mrb[0].mxu0
        %v1140 = vadd.f32 %v1043, %v1139
        %v1141 = vpop.f32.mrb[0].mxu0
        %1142 = vmatprep.mubr.bf16.mxu0 0
        %1143 = vmatmul.mubr.bf16.gmra.mrb[0].mxu0 %v788
        %v1144 = vpop.f32.mrb[0].mxu0
        %v1145 = vadd.f32 %v1048, %v1144
        %v1146 = vpop.f32.mrb[0].mxu0
        %v1147 = vpop.f32.mrb[0].mxu0
        %v1148 = vadd.f32 %v1051, %v1147
        %v1149 = vpop.f32.mrb[0].mxu0
        %1150 = vmatprep.mubr.bf16.mxu0 0
        %1151 = vmatmul.mubr.bf16.gmra.mrb[0].mxu0 %v791
        %v1152 = vpop.f32.mrb[0].mxu0
        %v1153 = vadd.f32 %v1056, %v1152
        %v1154 = vpop.f32.mrb[0].mxu0
        %v1155 = vpop.f32.mrb[0].mxu0
        %v1156 = vadd.f32 %v1059, %v1155
        %v1157 = vpop.f32.mrb[0].mxu0
        %1158 = vmatprep.mubr.bf16.mxu0 0
        %1159 = vmatmul.mubr.bf16.gmra.mrb[0].mxu0 %v794
        %v1160 = vpop.f32.mrb[0].mxu0
        %v1161 = vadd.f32 %v1064, %v1160
        %v1162 = vpop.f32.mrb[0].mxu0
        %v1163 = vpop.f32.mrb[0].mxu0
        %v1164 = vadd.f32 %v1067, %v1163
        %v1165 = vpop.f32.mrb[0].mxu0
        %1166 = vmatprep.mubr.bf16.mxu0 0
        %1167 = vmatmul.mubr.bf16.gmra.mrb[0].mxu0 %v797
        %v1168 = vpop.f32.mrb[0].mxu0
        %v1169 = vadd.f32 %v1072, %v1168
        %v1170 = vpop.f32.mrb[0].mxu0
        %v1171 = vpop.f32.mrb[0].mxu0
        %v1172 = vadd.f32 %v1075, %v1171
        %v1173 = vpop.f32.mrb[0].mxu0
        %1174 = vdwg.mxu0
        %v1175 = vlaneseq
        %v1176 = vshrl.u32 %v1175, 7
        %v1177 = vsub.s32 0, %v1176
        %v1178 = vrot.slane %v333, %v1177
        %v1179 = vadd.f32 %v1113, %v1178
        %v1180 = vadd.f32 %v1116, %v1178
        %v1181 = vadd.f32 %v1121, %v1178
        %v1182 = vadd.f32 %v1124, %v1178
        %v1183 = vadd.f32 %v1129, %v1178
        %v1184 = vadd.f32 %v1132, %v1178
        %v1185 = vadd.f32 %v1137, %v1178
        %v1186 = vadd.f32 %v1140, %v1178
        %v1187 = vadd.f32 %v1145, %v1178
        %v1188 = vadd.f32 %v1148, %v1178
        %v1189 = vadd.f32 %v1153, %v1178
        %v1190 = vadd.f32 %v1156, %v1178
        %v1191 = vadd.f32 %v1161, %v1178
        %v1192 = vadd.f32 %v1164, %v1178
        %v1193 = vadd.f32 %v1169, %v1178
        %v1194 = vadd.f32 %v1172, %v1178
        %v1195 = vmax.f32 %v1179, 0.0
        %v1196 = vmax.f32 %v1180, 0.0
        %v1197 = vmax.f32 %v1181, 0.0
        %v1198 = vmax.f32 %v1182, 0.0
        %v1199 = vmax.f32 %v1183, 0.0
        %v1200 = vmax.f32 %v1184, 0.0
        %v1201 = vmax.f32 %v1185, 0.0
        %v1202 = vmax.f32 %v1186, 0.0
        %v1203 = vmax.f32 %v1187, 0.0
        %v1204 = vmax.f32 %v1188, 0.0
        %v1205 = vmax.f32 %v1189, 0.0
        %v1206 = vmax.f32 %v1190, 0.0
        %v1207 = vmax.f32 %v1191, 0.0
        %v1208 = vmax.f32 %v1192, 0.0
        %v1209 = vmax.f32 %v1193, 0.0
        %v1210 = vmax.f32 %v1194, 0.0
        %s1211 = scalar_lea.vmem [#allocation4], %s761
        %1212 = vst.msk [vmem:[%s1211] sm:$0xff] %vm859, %v1195
        %1213 = vst.msk [vmem:[%s1211 + $0x8] sm:$0xff] %vm859, %v1196
        %1214 = vst.msk [vmem:[%s1211 + $0x10] sm:$0xff] %vm859, %v1197
        %1215 = vst.msk [vmem:[%s1211 + $0x18] sm:$0xff] %vm859, %v1198
        %1216 = vst.msk [vmem:[%s1211 + $0x20] sm:$0xff] %vm859, %v1199
        %1217 = vst.msk [vmem:[%s1211 + $0x28] sm:$0xff] %vm859, %v1200
        %1218 = vst.msk [vmem:[%s1211 + $0x30] sm:$0xff] %vm859, %v1201
        %1219 = vst.msk [vmem:[%s1211 + $0x38] sm:$0xff] %vm859, %v1202
        %1220 = vst.msk [vmem:[%s1211 + $0x40] sm:$0xff] %vm859, %v1203
        %1221 = vst.msk [vmem:[%s1211 + $0x48] sm:$0xff] %vm859, %v1204
        %1222 = vst.msk [vmem:[%s1211 + $0x50] sm:$0xff] %vm859, %v1205
        %1223 = vst.msk [vmem:[%s1211 + $0x58] sm:$0xff] %vm859, %v1206
        %1224 = vst.msk [vmem:[%s1211 + $0x60] sm:$0xff] %vm859, %v1207
        %1225 = vst.msk [vmem:[%s1211 + $0x68] sm:$0xff] %vm859, %v1208
        %1226 = vst.msk [vmem:[%s1211 + $0x70] sm:$0xff] %vm859, %v1209
        %1227 = vst.msk [vmem:[%s1211 + $0x78] sm:$0xff] %vm859, %v1210
        // Predicated region
        $region49: #{tpu_custom_call.1} parent=39 // pred_check
          %p1228 = pneg %p279
        $region50: #{tpu_custom_call.1} parent=39 // pred_check_branch
          %1230 = sbr.rel (%p1228) target = $region52
        $region51: #{tpu_custom_call.1} parent=39 // pred_region
          %v1231 = vld [vmem:[#allocation4] sm:$0xff]
          %v1232 = vld [vmem:[#allocation4 + $0x8] sm:$0xff]
          %v1233 = vld [vmem:[#allocation4 + $0x10] sm:$0xff]
          %v1234 = vld [vmem:[#allocation4 + $0x18] sm:$0xff]
          %v1235 = vld [vmem:[#allocation4 + $0x20] sm:$0xff]
          %v1236 = vld [vmem:[#allocation4 + $0x28] sm:$0xff]
          %v1237 = vld [vmem:[#allocation4 + $0x30] sm:$0xff]
          %v1238 = vld [vmem:[#allocation4 + $0x38] sm:$0xff]
          %v1239 = vld [vmem:[#allocation4 + $0x40] sm:$0xff]
          %v1240 = vld [vmem:[#allocation4 + $0x48] sm:$0xff]
          %v1241 = vld [vmem:[#allocation4 + $0x50] sm:$0xff]
          %v1242 = vld [vmem:[#allocation4 + $0x58] sm:$0xff]
          %v1243 = vld [vmem:[#allocation4 + $0x60] sm:$0xff]
          %v1244 = vld [vmem:[#allocation4 + $0x68] sm:$0xff]
          %v1245 = vld [vmem:[#allocation4 + $0x70] sm:$0xff]
          %v1246 = vld [vmem:[#allocation4 + $0x78] sm:$0xff]
          %v1247 = vlaneseq
          %v1248 = vshrl.u32 %v1247, 7
          %v1249 = vadd.s32 %v1248, 8
          %v1250 = vadd.s32 %v1248, 16
          %v1251 = vadd.s32 %v1248, 24
          %v1252 = vadd.s32 %v1248, 32
          %v1253 = vadd.s32 %v1248, 40
          %v1254 = vadd.s32 %v1248, 48
          %v1255 = vadd.s32 %v1248, 56
          %v1256 = vadd.s32 %v1248, 64
          %v1257 = vadd.s32 %v1248, 72
          %v1258 = vadd.s32 %v1248, 80
          %v1259 = vadd.s32 %v1248, 88
          %v1260 = vadd.s32 %v1248, 96
          %v1261 = vadd.s32 %v1248, 104
          %v1262 = vadd.s32 %v1248, 112
          %v1263 = vadd.s32 %v1248, 120
          %vm1264 = vcmp.lt.s32.totalorder %v1248, 16
          %vm1265 = vcmp.lt.s32.totalorder %v1249, 16
          %vm1266 = vcmp.lt.s32.totalorder %v1250, 16
          %vm1267 = vcmp.lt.s32.totalorder %v1251, 16
          %vm1268 = vcmp.lt.s32.totalorder %v1252, 16
          %vm1269 = vcmp.lt.s32.totalorder %v1253, 16
          %vm1270 = vcmp.lt.s32.totalorder %v1254, 16
          %vm1271 = vcmp.lt.s32.totalorder %v1255, 16
          %vm1272 = vcmp.lt.s32.totalorder %v1256, 16
          %vm1273 = vcmp.lt.s32.totalorder %v1257, 16
          %vm1274 = vcmp.lt.s32.totalorder %v1258, 16
          %vm1275 = vcmp.lt.s32.totalorder %v1259, 16
          %vm1276 = vcmp.lt.s32.totalorder %v1260, 16
          %vm1277 = vcmp.lt.s32.totalorder %v1261, 16
          %vm1278 = vcmp.lt.s32.totalorder %v1262, 16
          %vm1279 = vcmp.lt.s32.totalorder %v1263, 16
          %v1280 = vsel %vm1264, 1, 0
          %v1281 = vsel %vm1265, 1, 0
          %v1282 = vsel %vm1266, 1, 0
          %v1283 = vsel %vm1267, 1, 0
          %v1284 = vsel %vm1268, 1, 0
          %v1285 = vsel %vm1269, 1, 0
          %v1286 = vsel %vm1270, 1, 0
          %v1287 = vsel %vm1271, 1, 0
          %v1288 = vsel %vm1272, 1, 0
          %v1289 = vsel %vm1273, 1, 0
          %v1290 = vsel %vm1274, 1, 0
          %v1291 = vsel %vm1275, 1, 0
          %v1292 = vsel %vm1276, 1, 0
          %v1293 = vsel %vm1277, 1, 0
          %v1294 = vsel %vm1278, 1, 0
          %v1295 = vsel %vm1279, 1, 0
          %v1296 = vcvt.s32.f32 %v1280
          %v1297 = vcvt.s32.f32 %v1281
          %v1298 = vcvt.s32.f32 %v1282
          %v1299 = vcvt.s32.f32 %v1283
          %v1300 = vcvt.s32.f32 %v1284
          %v1301 = vcvt.s32.f32 %v1285
          %v1302 = vcvt.s32.f32 %v1286
          %v1303 = vcvt.s32.f32 %v1287
          %v1304 = vcvt.s32.f32 %v1288
          %v1305 = vcvt.s32.f32 %v1289
          %v1306 = vcvt.s32.f32 %v1290
          %v1307 = vcvt.s32.f32 %v1291
          %v1308 = vcvt.s32.f32 %v1292
          %v1309 = vcvt.s32.f32 %v1293
          %v1310 = vcvt.s32.f32 %v1294
          %v1311 = vcvt.s32.f32 %v1295
          %v1312 = vmul.f32 %v1231, %v1296
          %v1313 = vmul.f32 %v1232, %v1297
          %v1314 = vmul.f32 %v1233, %v1298
          %v1315 = vmul.f32 %v1234, %v1299
          %v1316 = vmul.f32 %v1235, %v1300
          %v1317 = vmul.f32 %v1236, %v1301
          %v1318 = vmul.f32 %v1237, %v1302
          %v1319 = vmul.f32 %v1238, %v1303
          %v1320 = vmul.f32 %v1239, %v1304
          %v1321 = vmul.f32 %v1240, %v1305
          %v1322 = vmul.f32 %v1241, %v1306
          %v1323 = vmul.f32 %v1242, %v1307
          %v1324 = vmul.f32 %v1243, %v1308
          %v1325 = vmul.f32 %v1244, %v1309
          %v1326 = vmul.f32 %v1245, %v1310
          %v1327 = vmul.f32 %v1246, %v1311
          %v1328 = vsel %vm859, %v1312, 0.0
          %v1329 = vsel %vm859, %v1313, 0.0
          %v1330 = vadd.f32 %v1328, %v1329
          %v1331 = vsel %vm859, %v1314, 0.0
          %v1332 = vadd.f32 %v1330, %v1331
          %v1333 = vsel %vm859, %v1315, 0.0
          %v1334 = vadd.f32 %v1332, %v1333
          %v1335 = vsel %vm859, %v1316, 0.0
          %v1336 = vadd.f32 %v1334, %v1335
          %v1337 = vsel %vm859, %v1317, 0.0
          %v1338 = vadd.f32 %v1336, %v1337
          %v1339 = vsel %vm859, %v1318, 0.0
          %v1340 = vadd.f32 %v1338, %v1339
          %v1341 = vsel %vm859, %v1319, 0.0
          %v1342 = vadd.f32 %v1340, %v1341
          %v1343 = vsel %vm859, %v1320, 0.0
          %v1344 = vadd.f32 %v1342, %v1343
          %v1345 = vsel %vm859, %v1321, 0.0
          %v1346 = vadd.f32 %v1344, %v1345
          %v1347 = vsel %vm859, %v1322, 0.0
          %v1348 = vadd.f32 %v1346, %v1347
          %v1349 = vsel %vm859, %v1323, 0.0
          %v1350 = vadd.f32 %v1348, %v1349
          %v1351 = vsel %vm859, %v1324, 0.0
          %v1352 = vadd.f32 %v1350, %v1351
          %v1353 = vsel %vm859, %v1325, 0.0
          %v1354 = vadd.f32 %v1352, %v1353
          %v1355 = vsel %vm859, %v1326, 0.0
          %v1356 = vadd.f32 %v1354, %v1355
          %v1357 = vsel %vm859, %v1327, 0.0
          %v1358 = vadd.f32 %v1356, %v1357
          %v1359 = vrot.slane %v1358, 4
          %v1360 = vadd.f32 %v1358, %v1359
          %v1361 = vrot.slane %v1360, 2
          %v1362 = vadd.f32 %v1360, %v1361
          %v1363 = vrot.slane %v1362, 1
          %v1364 = vadd.f32 %v1362, %v1363
          %v1365 = vmul.f32 %v1364, 0.0625
          %v1366 = vsub.f32 %v1231, %v1365
          %v1367 = vsub.f32 %v1232, %v1365
          %v1368 = vsub.f32 %v1233, %v1365
          %v1369 = vsub.f32 %v1234, %v1365
          %v1370 = vsub.f32 %v1235, %v1365
          %v1371 = vsub.f32 %v1236, %v1365
          %v1372 = vsub.f32 %v1237, %v1365
          %v1373 = vsub.f32 %v1238, %v1365
          %v1374 = vsub.f32 %v1239, %v1365
          %v1375 = vsub.f32 %v1240, %v1365
          %v1376 = vsub.f32 %v1241, %v1365
          %v1377 = vsub.f32 %v1242, %v1365
          %v1378 = vsub.f32 %v1243, %v1365
          %v1379 = vsub.f32 %v1244, %v1365
          %v1380 = vsub.f32 %v1245, %v1365
          %v1381 = vsub.f32 %v1246, %v1365
          %v1382 = vmul.f32 %v1366, %v1296
          %v1383 = vmul.f32 %v1367, %v1297
          %v1384 = vmul.f32 %v1368, %v1298
          %v1385 = vmul.f32 %v1369, %v1299
          %v1386 = vmul.f32 %v1370, %v1300
          %v1387 = vmul.f32 %v1371, %v1301
          %v1388 = vmul.f32 %v1372, %v1302
          %v1389 = vmul.f32 %v1373, %v1303
          %v1390 = vmul.f32 %v1374, %v1304
          %v1391 = vmul.f32 %v1375, %v1305
          %v1392 = vmul.f32 %v1376, %v1306
          %v1393 = vmul.f32 %v1377, %v1307
          %v1394 = vmul.f32 %v1378, %v1308
          %v1395 = vmul.f32 %v1379, %v1309
          %v1396 = vmul.f32 %v1380, %v1310
          %v1397 = vmul.f32 %v1381, %v1311
          %v1398 = vmul.f32 %v1382, %v1382
          %v1399 = vmul.f32 %v1383, %v1383
          %v1400 = vmul.f32 %v1384, %v1384
          %v1401 = vmul.f32 %v1385, %v1385
          %v1402 = vmul.f32 %v1386, %v1386
          %v1403 = vmul.f32 %v1387, %v1387
          %v1404 = vmul.f32 %v1388, %v1388
          %v1405 = vmul.f32 %v1389, %v1389
          %v1406 = vmul.f32 %v1390, %v1390
          %v1407 = vmul.f32 %v1391, %v1391
          %v1408 = vmul.f32 %v1392, %v1392
          %v1409 = vmul.f32 %v1393, %v1393
          %v1410 = vmul.f32 %v1394, %v1394
          %v1411 = vmul.f32 %v1395, %v1395
          %v1412 = vmul.f32 %v1396, %v1396
          %v1413 = vmul.f32 %v1397, %v1397
          %v1414 = vsel %vm859, %v1398, 0.0
          %v1415 = vsel %vm859, %v1399, 0.0
          %v1416 = vadd.f32 %v1414, %v1415
          %v1417 = vsel %vm859, %v1400, 0.0
          %v1418 = vadd.f32 %v1416, %v1417
          %v1419 = vsel %vm859, %v1401, 0.0
          %v1420 = vadd.f32 %v1418, %v1419
          %v1421 = vsel %vm859, %v1402, 0.0
          %v1422 = vadd.f32 %v1420, %v1421
          %v1423 = vsel %vm859, %v1403, 0.0
          %v1424 = vadd.f32 %v1422, %v1423
          %v1425 = vsel %vm859, %v1404, 0.0
          %v1426 = vadd.f32 %v1424, %v1425
          %v1427 = vsel %vm859, %v1405, 0.0
          %v1428 = vadd.f32 %v1426, %v1427
          %v1429 = vsel %vm859, %v1406, 0.0
          %v1430 = vadd.f32 %v1428, %v1429
          %v1431 = vsel %vm859, %v1407, 0.0
          %v1432 = vadd.f32 %v1430, %v1431
          %v1433 = vsel %vm859, %v1408, 0.0
          %v1434 = vadd.f32 %v1432, %v1433
          %v1435 = vsel %vm859, %v1409, 0.0
          %v1436 = vadd.f32 %v1434, %v1435
          %v1437 = vsel %vm859, %v1410, 0.0
          %v1438 = vadd.f32 %v1436, %v1437
          %v1439 = vsel %vm859, %v1411, 0.0
          %v1440 = vadd.f32 %v1438, %v1439
          %v1441 = vsel %vm859, %v1412, 0.0
          %v1442 = vadd.f32 %v1440, %v1441
          %v1443 = vsel %vm859, %v1413, 0.0
          %v1444 = vadd.f32 %v1442, %v1443
          %v1445 = vrot.slane %v1444, 4
          %v1446 = vadd.f32 %v1444, %v1445
          %v1447 = vrot.slane %v1446, 2
          %v1448 = vadd.f32 %v1446, %v1447
          %v1449 = vrot.slane %v1448, 1
          %v1450 = vadd.f32 %v1448, %v1449
          %v1451 = vmul.f32 %v1450, 0.0625
          %v1452 = vadd.f32 %v1451, 1e-05
          %v1453 = vrsqrt.pop %v1452
          %v1454 = vmul.f32 %v333, %v1453
          %v1455 = vmul.f32 %v1365, %v1454
          %v1457 = vrot.slane %v1455, 7
          %v1459 = vsub.f32 %v333, %v1457
          %v1460 = vlaneseq
          %v1461 = vshrl.u32 %v1460, 7
          %v1462 = vsub.s32 1, %v1461
          %v1463 = vrot.slane %v1454, %v1462
          %v1464 = vmul.f32 %v1231, %v1463
          %v1465 = vmul.f32 %v1232, %v1463
          %v1466 = vmul.f32 %v1233, %v1463
          %v1467 = vmul.f32 %v1234, %v1463
          %v1468 = vmul.f32 %v1235, %v1463
          %v1469 = vmul.f32 %v1236, %v1463
          %v1470 = vmul.f32 %v1237, %v1463
          %v1471 = vmul.f32 %v1238, %v1463
          %v1472 = vmul.f32 %v1239, %v1463
          %v1473 = vmul.f32 %v1240, %v1463
          %v1474 = vmul.f32 %v1241, %v1463
          %v1475 = vmul.f32 %v1242, %v1463
          %v1476 = vmul.f32 %v1243, %v1463
          %v1477 = vmul.f32 %v1244, %v1463
          %v1478 = vmul.f32 %v1245, %v1463
          %v1479 = vmul.f32 %v1246, %v1463
          %v1480 = vlaneseq
          %v1481 = vshrl.u32 %v1480, 7
          %v1482 = vsub.s32 2, %v1481
          %v1483 = vrot.slane %v1459, %v1482
          %v1484 = vadd.f32 %v1464, %v1483
          %v1485 = vadd.f32 %v1465, %v1483
          %v1486 = vadd.f32 %v1466, %v1483
          %v1487 = vadd.f32 %v1467, %v1483
          %v1488 = vadd.f32 %v1468, %v1483
          %v1489 = vadd.f32 %v1469, %v1483
          %v1490 = vadd.f32 %v1470, %v1483
          %v1491 = vadd.f32 %v1471, %v1483
          %v1492 = vadd.f32 %v1472, %v1483
          %v1493 = vadd.f32 %v1473, %v1483
          %v1494 = vadd.f32 %v1474, %v1483
          %v1495 = vadd.f32 %v1475, %v1483
          %v1496 = vadd.f32 %v1476, %v1483
          %v1497 = vadd.f32 %v1477, %v1483
          %v1498 = vadd.f32 %v1478, %v1483
          %v1499 = vadd.f32 %v1479, %v1483
          %v1500 = vmul.f32 %v1484, %v1296
          %v1501 = vmul.f32 %v1485, %v1297
          %v1502 = vmul.f32 %v1486, %v1298
          %v1503 = vmul.f32 %v1487, %v1299
          %v1504 = vmul.f32 %v1488, %v1300
          %v1505 = vmul.f32 %v1489, %v1301
          %v1506 = vmul.f32 %v1490, %v1302
          %v1507 = vmul.f32 %v1491, %v1303
          %v1508 = vmul.f32 %v1492, %v1304
          %v1509 = vmul.f32 %v1493, %v1305
          %v1510 = vmul.f32 %v1494, %v1306
          %v1511 = vmul.f32 %v1495, %v1307
          %v1512 = vmul.f32 %v1496, %v1308
          %v1513 = vmul.f32 %v1497, %v1309
          %v1514 = vmul.f32 %v1498, %v1310
          %v1515 = vmul.f32 %v1499, %v1311
          %v1516 = vld [vmem:[%s4] sm:$0x3]
          %1517 = vmatprep.subr.mxu0 0.0
          %1518 = vmatpush1.msra.mxu0 %v1500
          %1519 = vmatprep.subr.mxu0 0.0
          %1520 = vmatpush1.msra.mxu0 %v1501
          %1521 = vmatprep.subr.mxu0 0.0
          %1522 = vmatpush1.msra.mxu0 %v1502
          %1523 = vmatprep.subr.mxu0 0.0
          %1524 = vmatpush1.msra.mxu0 %v1503
          %1525 = vmatprep.subr.mxu0 0.0
          %1526 = vmatpush1.msra.mxu0 %v1504
          %1527 = vmatprep.subr.mxu0 0.0
          %1528 = vmatpush1.msra.mxu0 %v1505
          %1529 = vmatprep.subr.mxu0 0.0
          %1530 = vmatpush1.msra.mxu0 %v1506
          %1531 = vmatprep.subr.mxu0 0.0
          %1532 = vmatpush1.msra.mxu0 %v1507
          %1533 = vmatprep.subr.mxu0 0.0
          %1534 = vmatpush1.msra.mxu0 %v1508
          %1535 = vmatprep.subr.mxu0 0.0
          %1536 = vmatpush1.msra.mxu0 %v1509
          %1537 = vmatprep.subr.mxu0 0.0
          %1538 = vmatpush1.msra.mxu0 %v1510
          %1539 = vmatprep.subr.mxu0 0.0
          %1540 = vmatpush1.msra.mxu0 %v1511
          %1541 = vmatprep.subr.mxu0 0.0
          %1542 = vmatpush1.msra.mxu0 %v1512
          %1543 = vmatprep.subr.mxu0 0.0
          %1544 = vmatpush1.msra.mxu0 %v1513
          %1545 = vmatprep.subr.mxu0 0.0
          %1546 = vmatpush1.msra.mxu0 %v1514
          %1547 = vmatprep.subr.mxu0 0.0
          %1548 = vmatpush1.msra.mxu0 %v1515
          %1549 = vmatprep.subr.mxu0 0.0
          %1550 = vmatpush1.msra.mxu0 0.0
          %1551 = vmatprep.subr.mxu0 0.0
          %1552 = vmatpush1.msra.mxu0 0.0
          %1553 = vmatprep.subr.mxu0 0.0
          %1554 = vmatpush1.msra.mxu0 0.0
          %1555 = vmatprep.subr.mxu0 0.0
          %1556 = vmatpush1.msra.mxu0 0.0
          %1557 = vmatprep.subr.mxu0 0.0
          %1558 = vmatpush1.msra.mxu0 0.0
          %1559 = vmatprep.subr.mxu0 0.0
          %1560 = vmatpush1.msra.mxu0 0.0
          %1561 = vmatprep.subr.mxu0 0.0
          %1562 = vmatpush1.msra.mxu0 0.0
          %1563 = vmatprep.subr.mxu0 0.0
          %1564 = vmatpush1.msra.mxu0 0.0
          %1565 = vmatprep.subr.mxu0 0.0
          %1566 = vmatpush1.msra.mxu0 0.0
          %1567 = vmatprep.subr.mxu0 0.0
          %1568 = vmatpush1.msra.mxu0 0.0
          %1569 = vmatprep.subr.mxu0 0.0
          %1570 = vmatpush1.msra.mxu0 0.0
          %1571 = vmatprep.subr.mxu0 0.0
          %1572 = vmatpush1.msra.mxu0 0.0
          %1573 = vmatprep.subr.mxu0 0.0
          %1574 = vmatpush1.msra.mxu0 0.0
          %1575 = vmatprep.subr.mxu0 0.0
          %1576 = vmatpush1.msra.mxu0 0.0
          %1577 = vmatprep.subr.mxu0 0.0
          %1578 = vmatpush1.msra.mxu0 0.0
          %1579 = vmatprep.subr.mxu0 0.0
          %1580 = vmatpush1.msra.mxu0 0.0
          %1581 = vmatprep.mubr.f32.mxu0 0.0
          %1582 = vmatmul.mubr.f32.gmra.mrb[0].mxu0 %v1516
          %v1583 = vpop.f32.mrb[0].mxu0
          %v1584 = vadd.f32 0.0, %v1583
          %v1585 = vpop.f32.mrb[0].mxu0
          %1586 = vdwg.mxu0
          %vm1587 = vcmask 254976
          %1588 = vst.msk [vmem:[%s260] sm:$0x3] %vm1587, %v1584
          %1589 = vst.msk [vmem:[#allocation2] sm:$0xff] %vm859, %v1500
          %1590 = vst.msk [vmem:[#allocation2 + $0x8] sm:$0xff] %vm859, %v1501
          %1591 = vst.msk [vmem:[#allocation2 + $0x10] sm:$0xff] %vm859, %v1502
          %1592 = vst.msk [vmem:[#allocation2 + $0x18] sm:$0xff] %vm859, %v1503
          %1593 = vst.msk [vmem:[#allocation2 + $0x20] sm:$0xff] %vm859, %v1504
          %1594 = vst.msk [vmem:[#allocation2 + $0x28] sm:$0xff] %vm859, %v1505
          %1595 = vst.msk [vmem:[#allocation2 + $0x30] sm:$0xff] %vm859, %v1506
          %1596 = vst.msk [vmem:[#allocation2 + $0x38] sm:$0xff] %vm859, %v1507
          %1597 = vst.msk [vmem:[#allocation2 + $0x40] sm:$0xff] %vm859, %v1508
          %1598 = vst.msk [vmem:[#allocation2 + $0x48] sm:$0xff] %vm859, %v1509
          %1599 = vst.msk [vmem:[#allocation2 + $0x50] sm:$0xff] %vm859, %v1510
          %1600 = vst.msk [vmem:[#allocation2 + $0x58] sm:$0xff] %vm859, %v1511
          %1601 = vst.msk [vmem:[#allocation2 + $0x60] sm:$0xff] %vm859, %v1512
          %1602 = vst.msk [vmem:[#allocation2 + $0x68] sm:$0xff] %vm859, %v1513
          %1603 = vst.msk [vmem:[#allocation2 + $0x70] sm:$0xff] %vm859, %v1514
          %1604 = vst.msk [vmem:[#allocation2 + $0x78] sm:$0xff] %vm859, %v1515
        $region52: #{tpu_custom_call.1} parent=39 // pred_fallthru
          _
        %s1605 = sand.u32 %s159, 1
        %s1606 = scalar_lea.sflag [#allocation6], %s1605
        %s1607 = sand.u32 %s159, 1
        %s1608 = smul.addr %s1607, 2
        %s1609 = scalar_lea.vmem [#allocation5], %s1608
        // Predicated region
        $region53: #{tpu_custom_call.1} parent=39 // pred_check
          %p1610 = pneg %p169
        $region54: #{tpu_custom_call.1} parent=39 // pred_check_branch
          %1612 = sbr.rel (%p1610) target = $region56
        $region55: #{tpu_custom_call.1} parent=39 // pred_region
          %s1614 = ssub.s32 32, 32
          %1615 = vsyncadd %s1606, %s1614
          %s1616 = smul.addr %s23, 32
          %s1617 = scalar_lea.hbm %s5, %s1616
          %s1619 = sshll.u32 %s1609, 4
          %s1620 = int_to_ptr.vmem [resolvable:$true] %s1619
          %1622 = dma.vmem_to_hbm [thread:$0]  %s1620, 32, %s1617, %s1606
        $region56: #{tpu_custom_call.1} parent=39 // pred_fallthru
          _
      $region40: #{tpu_custom_call.1} parent=5 // pred_fallthru
        _
      %p1623 = scmp.le.s32.totalorder 2, %s14
      // Predicated region
      $region57: #{tpu_custom_call.1} parent=5 // pred_check
        %p1624 = pneg %p1623
      $region58: #{tpu_custom_call.1} parent=5 // pred_check_branch
        %1626 = sbr.rel (%p1624) target = $region60
      $region59: #{tpu_custom_call.1} parent=5 // pred_region
        %s1627 = ssub.s32 %s14, 2
        // Predicated region
        $region61: #{tpu_custom_call.1} parent=59 // pred_check
          %p1628 = pneg %p175
        $region62: #{tpu_custom_call.1} parent=59 // pred_check_branch
          %1630 = sbr.rel (%p1628) target = $region64
        $region63: #{tpu_custom_call.1} parent=59 // pred_region
          %s1631 = sand.u32 %s160, 1
          %s1632 = scalar_lea.sflag [#allocation6], %s1631
          %s1633 = sand.u32 %s160, 1
          %s1634 = smul.addr %s1633, 2
          %s1635 = scalar_lea.vmem [#allocation5], %s1634
          %1636 = dma.done %s1632, 32
        $region64: #{tpu_custom_call.1} parent=59 // pred_fallthru
          _
      $region60: #{tpu_custom_call.1} parent=5 // pred_fallthru
        _
    $region6: #{tpu_custom_call.1} parent=1 // loop_footer
      %s18 = sadd.s32 1, %s14
    $region7: #{tpu_custom_call.1} parent=1 // loop_footer_branch
      %13 = sbr.rel target = $region3
    $region8: #{tpu_custom_call.1} parent=1 // loop_exit
      _
    %1637 = vsyncpa [#allocation6], 1
    %s1638 = scalar_lea.sflag [#allocation6], 1
    %1639 = vsyncpa %s1638, 1

</llo_original>
